<compile_context>
chip_gen: v6e
topology: v6e:2x2x1
jax: 0.10.0
libtpu: 0.0.40
codegen_flags: <defaults>
</compile_context>

<pallas_src>
import functools

import jax
import jax.numpy as jnp
from jax import lax
from jax.experimental import pallas as pl
from jax.experimental.pallas import tpu as pltpu

COMMITMENT_COST = 0.25
EMBEDDING_DIM = 64
NUM_EMBEDDINGS = 512


def _round_up(x, m):
    return ((x + m - 1) // m) * m


def _cdiv(a, b):
    return -(-a // b)


def _vq_kernel(x_ref, e_sq_ref, emb_ref, q_ref, enc_ref, sqerr_ref, counts_ref,
               *, tile, hw_valid, need_mask):
    """One spatial tile of one batch: distances -> nearest code -> one-hot ->
    quantize -> accumulate squared-error / code-count partials."""
    i = pl.program_id(1)  # spatial-tile index within this batch ("arbitrary" axis)

    # Zero the per-batch accumulators at the first spatial tile.
    @pl.when(i == 0)
    def _():
        sqerr_ref[...] = jnp.zeros_like(sqerr_ref)
        counts_ref[...] = jnp.zeros_like(counts_ref)

    x = x_ref[...]          # (tile, D) f32
    e = emb_ref[...]        # (K, D)    f32
    e_sq = e_sq_ref[...]    # (1, K)    f32 (precomputed ||e||^2, hoisted)
    k = e.shape[0]

    # Distances up to the per-row constant ||x||^2 (argmin is invariant to it):
    #   d(x, e_j) ~ ||e_j||^2 - 2 x.e_j
    # Fold the -2 into the small (tile, D) operand so the (tile, K) side is a
    # single add on top of the MXU result.
    xm2 = x * jnp.float32(-2.0)                                           # (tile, D)
    dist = jnp.dot(xm2, e.T, preferred_element_type=jnp.float32) + e_sq   # (tile, K)

    # Nearest code with first-occurrence tie-break (matches torch.argmin).
    # Only a (1, K) lane iota is materialized; it broadcasts against the rows.
    lane = lax.broadcasted_iota(jnp.int32, (1, k), 1)                     # (1, K)
    min_d = jnp.min(dist, axis=1, keepdims=True)                          # (tile, 1)
    idx = jnp.min(jnp.where(dist <= min_d, lane, k), axis=1, keepdims=True)
    onehot = lane == idx                                                  # (tile, K) bool

    if need_mask:
        rows = i * tile + lax.broadcasted_iota(jnp.int32, (tile, 1), 0)
        onehot = jnp.logical_and(onehot, rows < hw_valid)                 # kill padded rows

    enc = onehot.astype(jnp.float32)
    enc_ref[...] = enc            # f32 one-hot straight to HBM (no wrapper cast pass)

    # quantized = one_hot @ embedding  (exact row selection on the MXU)
    q = jnp.dot(enc, e, preferred_element_type=jnp.float32)               # (tile, D)
    q_ref[...] = q

    # Per-lane squared-error partials and per-code counts.  Padded rows
    # contribute 0: their one-hot row is masked and x is zero-padded.
    diff = q - x
    sqerr_ref[...] += jnp.sum(diff * diff, axis=0, keepdims=True)         # (1, D)
    counts_ref[...] += jnp.sum(enc, axis=0, keepdims=True)                # (1, K)


def _vq_pallas(x, embedding, e_sq, *, tile):
    """x: (B, H*W, D) f32.  Returns (quantized, encodings, sqerr, counts)."""
    b, hw, d = x.shape
    k = embedding.shape[0]

    # Spatial tiling within a batch; pad-and-mask handles remainders.
    tile_eff = min(tile, _round_up(hw, 8))
    steps = _cdiv(hw, tile_eff)
    hw_pad = steps * tile_eff
    need_mask = hw_pad != hw
    if need_mask:
        x = jnp.pad(x, ((0, 0), (0, hw_pad - hw), (0, 0)))

    kernel = functools.partial(
        _vq_kernel, tile=tile_eff, hw_valid=hw, need_mask=need_mask)

    row_map = lambda bi, i: (bi, i, 0)

    out_shapes = (
        jax.ShapeDtypeStruct((b, hw_pad, d), jnp.float32),   # quantized rows
        jax.ShapeDtypeStruct((b, hw_pad, k), jnp.float32),   # f32 one-hot encodings
        jax.ShapeDtypeStruct((b, 1, d), jnp.float32),        # per-batch sqerr lane partials
        jax.ShapeDtypeStruct((b, 1, k), jnp.float32),        # per-batch code counts
    )

    return pl.pallas_call(
        kernel,
        out_shape=out_shapes,
        grid_spec=pltpu.PrefetchScalarGridSpec(
            num_scalar_prefetch=0,
            grid=(b, steps),
            in_specs=[
                pl.BlockSpec((None, tile_eff, d), row_map),           # x rows
                pl.BlockSpec((1, k), lambda bi, i: (0, 0)),           # ||e||^2 (constant)
                pl.BlockSpec((k, d), lambda bi, i: (0, 0)),           # codebook (constant)
            ],
            out_specs=[
                pl.BlockSpec((None, tile_eff, d), row_map),           # quantized rows
                pl.BlockSpec((None, tile_eff, k), row_map),           # f32 one-hot rows
                pl.BlockSpec((None, 1, d), lambda bi, i: (bi, 0, 0)),  # sqerr accumulator
                pl.BlockSpec((None, 1, k), lambda bi, i: (bi, 0, 0)),  # counts accumulator
            ],
        ),
        compiler_params=pltpu.CompilerParams(
            dimension_semantics=("parallel", "arbitrary"),
            vmem_limit_bytes=32 * 1024 * 1024,
        ),
    )(x, e_sq, embedding)


@functools.partial(jax.jit, static_argnames=("tile",))
def vector_quantizer_forward(inputs_nchw, embedding, commitment_cost, *, tile=1024):
    """Forward pass matching the PyTorch VectorQuantizer.

    inputs_nchw: (B, C, H, W) with C == embedding_dim
    embedding:   (num_embeddings, embedding_dim)
    Returns (loss, quantized_nchw, perplexity, encodings).
    """
    b, c, h, w = inputs_nchw.shape
    hw = h * w
    n = b * hw

    # NCHW -> per-batch NHWC rows (B, H*W, C).
    x = jnp.transpose(inputs_nchw, (0, 2, 3, 1)).reshape(b, hw, c).astype(jnp.float32)

    emb = embedding.astype(jnp.float32)
    e_sq = jnp.sum(emb * emb, axis=1)[None, :]   # (1, K), hoisted out of the kernel

    q, enc, sqerr, counts = _vq_pallas(x, emb, e_sq, tile=tile)

    # Scalar glue (matches the PyTorch forward numerics):
    mse = jnp.sum(sqerr) / jnp.float32(n * c)    # == e_latent_loss == q_latent_loss
    loss = mse + commitment_cost * mse

    # Straight-through estimator: forward value of `quantized` is q itself.
    # TODO(synk): gradients (x + stop_gradient(q - x)) are not wired through this
    # forward-only kernel; a custom_vjp would be needed for training parity.
    quantized_nchw = jnp.transpose(q[:, :hw, :].reshape(b, h, w, c), (0, 3, 1, 2))

    encodings = enc[:, :hw, :].reshape(n, -1)    # already f32 -> no cast pass

    avg_probs = jnp.sum(counts, axis=(0, 1)) / jnp.float32(n)
    perplexity = jnp.exp(-jnp.sum(avg_probs * jnp.log(avg_probs + 1e-10)))

    return loss, quantized_nchw, perplexity, encodings


def _reference_forward(inputs_nchw, embedding, commitment_cost):
    """Pure-JAX reference for a correctness sanity check."""
    b, c, h, w = inputs_nchw.shape
    x = jnp.transpose(inputs_nchw, (0, 2, 3, 1)).reshape(-1, c)
    dist = (jnp.sum(x**2, axis=1, keepdims=True)
            + jnp.sum(embedding**2, axis=1)
            - 2.0 * x @ embedding.T)
    idx = jnp.argmin(dist, axis=1)
    enc = jax.nn.one_hot(idx, embedding.shape[0], dtype=jnp.float32)
    q = enc @ embedding
    mse = jnp.mean((q - x) ** 2)
    loss = mse + commitment_cost * mse
    q_nchw = jnp.transpose(q.reshape(b, h, w, c), (0, 3, 1, 2))
    avg_probs = jnp.mean(enc, axis=0)
    perplexity = jnp.exp(-jnp.sum(avg_probs * jnp.log(avg_probs + 1e-10)))
    return loss, q_nchw, perplexity, enc


if __name__ == "__main__":
    key = jax.random.PRNGKey(0)
    k_x, k_e = jax.random.split(key)

    # Small example consistent with the module: C must equal embedding_dim (=64).
    B, C, H, W = 2, EMBEDDING_DIM, 8, 8
    x = jax.random.normal(k_x, (B, C, H, W), dtype=jnp.float32)

    # nn.Embedding(num_embeddings, embedding_dim).weight ~ U(-1/K, 1/K)
    embedding = jax.random.uniform(
        k_e, (NUM_EMBEDDINGS, EMBEDDING_DIM),
        minval=-1.0 / NUM_EMBEDDINGS, maxval=1.0 / NUM_EMBEDDINGS,
        dtype=jnp.float32,
    )

    loss, quantized, perplexity, encodings = vector_quantizer_forward(
        x, embedding, COMMITMENT_COST
    )
    jax.block_until_ready((loss, quantized, perplexity, encodings))

    # Sanity check against the pure-JAX reference.
    ref_loss, ref_q, ref_perp, ref_enc = _reference_forward(x, embedding, COMMITMENT_COST)
    assert jnp.allclose(loss, ref_loss, atol=1e-5, rtol=1e-5)
    assert jnp.allclose(quantized, ref_q, atol=1e-5, rtol=1e-5)
    assert jnp.allclose(perplexity, ref_perp, atol=1e-4, rtol=1e-4)
    assert jnp.allclose(encodings, ref_enc)

    print("KERNEL_OK")
</pallas_src>

<mosaic_0001>
module attributes {stable_mosaic.version = 11 : i64} {
  func.func @_vq_kernel(%arg0: i32, %arg1: i32, %arg2: memref<1x64x64xf32, #tpu.memory_space<vmem>>, %arg3: memref<1x512xf32, #tpu.memory_space<vmem>>, %arg4: memref<512x64xf32, #tpu.memory_space<vmem>>, %arg5: memref<1x64x64xf32, #tpu.memory_space<vmem>>, %arg6: memref<1x64x512xf32, #tpu.memory_space<vmem>>, %arg7: memref<1x1x64xf32, #tpu.memory_space<vmem>>, %arg8: memref<1x1x512xf32, #tpu.memory_space<vmem>>) attributes {dimension_semantics = [#tpu.dimension_semantics<parallel>, #tpu.dimension_semantics<arbitrary>], iteration_bounds = array<i64: 2, 1>, scalar_prefetch = 0 : i64, scratch_operands = 0 : i64, tpu.core_type = #tpu.core_type<tc>, window_params = [{transform_indices = @transform_0, window_bounds = array<i64: 1, 64, 64>}, {pipeline_mode = #tpu.pipeline_mode<synchronous>, transform_indices = @transform_1, window_bounds = array<i64: 1, 512>}, {pipeline_mode = #tpu.pipeline_mode<synchronous>, transform_indices = @transform_2, window_bounds = array<i64: 512, 64>}, {transform_indices = @transform_3, window_bounds = array<i64: 1, 64, 64>}, {transform_indices = @transform_4, window_bounds = array<i64: 1, 64, 512>}, {transform_indices = @transform_5, window_bounds = array<i64: 1, 1, 64>}, {transform_indices = @transform_6, window_bounds = array<i64: 1, 1, 512>}]} {
    %c0_i32 = arith.constant 0 : i32
    %0 = arith.cmpi eq, %arg1, %c0_i32 : i32
    %1 = arith.extui %0 : i1 to i32
    %c0_i32_0 = arith.constant 0 : i32
    %2 = arith.cmpi ne, %1, %c0_i32_0 : i32
    scf.if %2 {
      %cst_31 = arith.constant 0.000000e+00 : f32
      %54 = vector.broadcast %cst_31 : f32 to vector<1x64xf32>
      %c0_32 = arith.constant 0 : index
      %c0_33 = arith.constant 0 : index
      %c0_34 = arith.constant 0 : index
      %55 = vector.load %arg7[%c0_32, %c0_33, %c0_34] : memref<1x1x64xf32, #tpu.memory_space<vmem>>, vector<1x1x64xf32>
      %56 = vector.shape_cast %55 : vector<1x1x64xf32> to vector<1x64xf32>
      %57 = vector.shape_cast %54 : vector<1x64xf32> to vector<1x1x64xf32>
      tpu.vector_store %arg7[%c0_32, %c0_33, %c0_34], %57 {strides = array<i32>} : memref<1x1x64xf32, #tpu.memory_space<vmem>>, vector<1x1x64xf32>,
      %cst_35 = arith.constant 0.000000e+00 : f32
      %58 = vector.broadcast %cst_35 : f32 to vector<1x512xf32>
      %c0_36 = arith.constant 0 : index
      %c0_37 = arith.constant 0 : index
      %c0_38 = arith.constant 0 : index
      %59 = vector.load %arg8[%c0_36, %c0_37, %c0_38] : memref<1x1x512xf32, #tpu.memory_space<vmem>>, vector<1x1x512xf32>
      %60 = vector.shape_cast %59 : vector<1x1x512xf32> to vector<1x512xf32>
      %61 = vector.shape_cast %58 : vector<1x512xf32> to vector<1x1x512xf32>
      tpu.vector_store %arg8[%c0_36, %c0_37, %c0_38], %61 {strides = array<i32>} : memref<1x1x512xf32, #tpu.memory_space<vmem>>, vector<1x1x512xf32>,
    } else {
    }
    %c0 = arith.constant 0 : index
    %c0_1 = arith.constant 0 : index
    %c0_2 = arith.constant 0 : index
    %3 = vector.load %arg2[%c0, %c0_1, %c0_2] : memref<1x64x64xf32, #tpu.memory_space<vmem>>, vector<1x64x64xf32>
    %4 = vector.shape_cast %3 : vector<1x64x64xf32> to vector<64x64xf32>
    %c0_3 = arith.constant 0 : index
    %c0_4 = arith.constant 0 : index
    %5 = vector.load %arg4[%c0_3, %c0_4] : memref<512x64xf32, #tpu.memory_space<vmem>>, vector<512x64xf32>
    %c0_5 = arith.constant 0 : index
    %c0_6 = arith.constant 0 : index
    %6 = vector.load %arg3[%c0_5, %c0_6] : memref<1x512xf32, #tpu.memory_space<vmem>>, vector<1x512xf32>
    %cst = arith.constant -2.000000e+00 : f32
    %7 = vector.broadcast %cst : f32 to vector<64x64xf32>
    %8 = arith.mulf %4, %7 : vector<64x64xf32>
    %9 = tpu.transpose %5, [1, 0] : vector<512x64xf32> -> vector<64x512xf32>
    %cst_7 = arith.constant dense<0.000000e+00> : vector<64x512xf32>
    %10 = tpu.matmul %8, %9, %cst_7 {dimension_numbers = #tpu.dot_dimension_numbers<[1], [0], [0], [1], [0, 0, 1, 1], [], []>} : vector<64x64xf32>, vector<64x512xf32>, vector<64x512xf32> -> vector<64x512xf32>
    %11 = vector.broadcast %6 : vector<1x512xf32> to vector<64x512xf32>
    %12 = arith.addf %10, %11 : vector<64x512xf32>
    %13 = tpu.iota {dimensions = array<i32: 1>} : vector<1x512xi32>
    %cst_8 = arith.constant dense<0x7F800000> : vector<64xf32>
    %14 = vector.multi_reduction <minimumf>, %12, %cst_8 [1] : vector<64x512xf32> to vector<64xf32>
    %15 = vector.shape_cast %14 : vector<64xf32> to vector<64x1xf32>
    %16 = vector.broadcast %15 : vector<64x1xf32> to vector<64x512xf32>
    %17 = arith.cmpf ole, %12, %16 : vector<64x512xf32>
    %c512_i32 = arith.constant 512 : i32
    %18 = vector.shape_cast %13 : vector<1x512xi32> to vector<1x512xi32>
    %19 = vector.broadcast %18 : vector<1x512xi32> to vector<64x512xi32>
    %20 = vector.broadcast %c512_i32 : i32 to vector<64x512xi32>
    %21 = arith.select %17, %19, %20 : vector<64x512xi1>, vector<64x512xi32>
    %cst_9 = arith.constant dense<2147483647> : vector<64xi32>
    %22 = vector.multi_reduction <minsi>, %21, %cst_9 [1] : vector<64x512xi32> to vector<64xi32>
    %23 = vector.shape_cast %22 : vector<64xi32> to vector<64x1xi32>
    %24 = vector.broadcast %13 : vector<1x512xi32> to vector<64x512xi32>
    %25 = vector.broadcast %23 : vector<64x1xi32> to vector<64x512xi32>
    %26 = arith.cmpi eq, %24, %25 : vector<64x512xi32>
    %27 = arith.extui %26 : vector<64x512xi1> to vector<64x512xi32>
    %28 = arith.sitofp %27 : vector<64x512xi32> to vector<64x512xf32>
    %c0_10 = arith.constant 0 : index
    %c0_11 = arith.constant 0 : index
    %c0_12 = arith.constant 0 : index
    %29 = vector.load %arg6[%c0_10, %c0_11, %c0_12] : memref<1x64x512xf32, #tpu.memory_space<vmem>>, vector<1x64x512xf32>
    %30 = vector.shape_cast %29 : vector<1x64x512xf32> to vector<64x512xf32>
    %31 = vector.shape_cast %28 : vector<64x512xf32> to vector<1x64x512xf32>
    tpu.vector_store %arg6[%c0_10, %c0_11, %c0_12], %31 {strides = array<i32>} : memref<1x64x512xf32, #tpu.memory_space<vmem>>, vector<1x64x512xf32>,
    %cst_13 = arith.constant dense<0.000000e+00> : vector<64x64xf32>
    %32 = tpu.matmul %28, %5, %cst_13 {dimension_numbers = #tpu.dot_dimension_numbers<[1], [0], [0], [1], [0, 0, 1, 1], [], []>} : vector<64x512xf32>, vector<512x64xf32>, vector<64x64xf32> -> vector<64x64xf32>
    %c0_14 = arith.constant 0 : index
    %c0_15 = arith.constant 0 : index
    %c0_16 = arith.constant 0 : index
    %33 = vector.load %arg5[%c0_14, %c0_15, %c0_16] : memref<1x64x64xf32, #tpu.memory_space<vmem>>, vector<1x64x64xf32>
    %34 = vector.shape_cast %33 : vector<1x64x64xf32> to vector<64x64xf32>
    %35 = vector.shape_cast %32 : vector<64x64xf32> to vector<1x64x64xf32>
    tpu.vector_store %arg5[%c0_14, %c0_15, %c0_16], %35 {strides = array<i32>} : memref<1x64x64xf32, #tpu.memory_space<vmem>>, vector<1x64x64xf32>,
    %36 = arith.subf %32, %4 : vector<64x64xf32>
    %c0_17 = arith.constant 0 : index
    %c0_18 = arith.constant 0 : index
    %c0_19 = arith.constant 0 : index
    %37 = vector.load %arg7[%c0_17, %c0_18, %c0_19] : memref<1x1x64xf32, #tpu.memory_space<vmem>>, vector<1x1x64xf32>
    %38 = vector.shape_cast %37 : vector<1x1x64xf32> to vector<1x64xf32>
    %39 = arith.mulf %36, %36 : vector<64x64xf32>
    %cst_20 = arith.constant dense<0.000000e+00> : vector<64xf32>
    %40 = vector.multi_reduction <add>, %39, %cst_20 [0] : vector<64x64xf32> to vector<64xf32>
    %41 = vector.shape_cast %40 : vector<64xf32> to vector<1x64xf32>
    %42 = arith.addf %38, %41 : vector<1x64xf32>
    %c0_21 = arith.constant 0 : index
    %c0_22 = arith.constant 0 : index
    %c0_23 = arith.constant 0 : index
    %43 = vector.load %arg7[%c0_21, %c0_22, %c0_23] : memref<1x1x64xf32, #tpu.memory_space<vmem>>, vector<1x1x64xf32>
    %44 = vector.shape_cast %43 : vector<1x1x64xf32> to vector<1x64xf32>
    %45 = vector.shape_cast %42 : vector<1x64xf32> to vector<1x1x64xf32>
    tpu.vector_store %arg7[%c0_21, %c0_22, %c0_23], %45 {strides = array<i32>} : memref<1x1x64xf32, #tpu.memory_space<vmem>>, vector<1x1x64xf32>,
    %c0_24 = arith.constant 0 : index
    %c0_25 = arith.constant 0 : index
    %c0_26 = arith.constant 0 : index
    %46 = vector.load %arg8[%c0_24, %c0_25, %c0_26] : memref<1x1x512xf32, #tpu.memory_space<vmem>>, vector<1x1x512xf32>
    %47 = vector.shape_cast %46 : vector<1x1x512xf32> to vector<1x512xf32>
    %cst_27 = arith.constant dense<0.000000e+00> : vector<512xf32>
    %48 = vector.multi_reduction <add>, %28, %cst_27 [0] : vector<64x512xf32> to vector<512xf32>
    %49 = vector.shape_cast %48 : vector<512xf32> to vector<1x512xf32>
    %50 = arith.addf %47, %49 : vector<1x512xf32>
    %c0_28 = arith.constant 0 : index
    %c0_29 = arith.constant 0 : index
    %c0_30 = arith.constant 0 : index
    %51 = vector.load %arg8[%c0_28, %c0_29, %c0_30] : memref<1x1x512xf32, #tpu.memory_space<vmem>>, vector<1x1x512xf32>
    %52 = vector.shape_cast %51 : vector<1x1x512xf32> to vector<1x512xf32>
    %53 = vector.shape_cast %50 : vector<1x512xf32> to vector<1x1x512xf32>
    tpu.vector_store %arg8[%c0_28, %c0_29, %c0_30], %53 {strides = array<i32>} : memref<1x1x512xf32, #tpu.memory_space<vmem>>, vector<1x1x512xf32>,
    return
  }
  func.func @transform_0(%arg0: i32, %arg1: i32) -> (i32, i32, i32) {
    %c0_i32 = arith.constant 0 : i32
    %c0_i32_0 = arith.constant 0 : i32
    return %arg0, %arg1, %c0_i32 : i32, i32, i32
  }
  func.func @transform_1(%arg0: i32, %arg1: i32) -> (i32, i32) {
    %c0_i32 = arith.constant 0 : i32
    %c0_i32_0 = arith.constant 0 : i32
    %c0_i32_1 = arith.constant 0 : i32
    return %c0_i32, %c0_i32_0 : i32, i32
  }
  func.func @transform_2(%arg0: i32, %arg1: i32) -> (i32, i32) {
    %c0_i32 = arith.constant 0 : i32
    %c0_i32_0 = arith.constant 0 : i32
    %c0_i32_1 = arith.constant 0 : i32
    return %c0_i32, %c0_i32_0 : i32, i32
  }
  func.func @transform_3(%arg0: i32, %arg1: i32) -> (i32, i32, i32) {
    %c0_i32 = arith.constant 0 : i32
    %c0_i32_0 = arith.constant 0 : i32
    return %arg0, %arg1, %c0_i32 : i32, i32, i32
  }
  func.func @transform_4(%arg0: i32, %arg1: i32) -> (i32, i32, i32) {
    %c0_i32 = arith.constant 0 : i32
    %c0_i32_0 = arith.constant 0 : i32
    return %arg0, %arg1, %c0_i32 : i32, i32, i32
  }
  func.func @transform_5(%arg0: i32, %arg1: i32) -> (i32, i32, i32) {
    %c0_i32 = arith.constant 0 : i32
    %c0_i32_0 = arith.constant 0 : i32
    %c0_i32_1 = arith.constant 0 : i32
    return %arg0, %c0_i32, %c0_i32_0 : i32, i32, i32
  }
  func.func @transform_6(%arg0: i32, %arg1: i32) -> (i32, i32, i32) {
    %c0_i32 = arith.constant 0 : i32
    %c0_i32_0 = arith.constant 0 : i32
    %c0_i32_1 = arith.constant 0 : i32
    return %arg0, %c0_i32, %c0_i32_0 : i32, i32, i32
  }
}

</mosaic_0001>

<llo_original>
// kernel: vector_quantizer_forward.1
$region0: #{vector_quantizer_forward.1}
  #allocation0 [shape = 'u32[]', space=smem, size = 0x4, offset = 0x4, fixed_abs, tag = 'smem constant byte address 0x4 - core index']
  #allocation1 [shape = 'u32[144,128]{1,0:T(1,128)}', space=vmem, size = 0x12000, scoped, tag = 'internal scratch']
  %s0 = inlined_call_operand.vmem [shape: f32[2,64,64], index: 0, kind: input, shape index: {}]
  %s1 = inlined_call_operand.vmem [shape: f32[1,512], index: 1, kind: input, shape index: {}]
  %s2 = inlined_call_operand.vmem [shape: f32[512,64], index: 2, kind: input, shape index: {}]
  %s3 = inlined_call_operand.hbm [shape: f32[2,64,64], index: 3, kind: output, shape index: {0}]
  %s4 = inlined_call_operand.hbm [shape: f32[2,64,512], index: 4, kind: output, shape index: {1}]
  %s5 = inlined_call_operand.vmem [shape: f32[2,1,64], index: 5, kind: output, shape index: {2}]
  %s6 = inlined_call_operand.vmem [shape: f32[2,1,512], index: 6, kind: output, shape index: {3}]
  %7 = xla_tuple %s3, %s4, %s5, %s6
  %s8 = sld [smem:[#allocation0]]
  $region73: #{vector_quantizer_forward.1} parent=0
    _
  %s10 = ssub.s32 1, %s8
  %s11 = scalar_select 0, %s10, %s8
  $region1: #{vector_quantizer_forward.1} parent=0
    #allocation2 [shape = 'u8[65536]{0}', space=vmem, size = 0x10000, scoped, tag = 'output window, operand 0']
    #allocation3 [shape = 's32[2]{0}', space=sflag, size = 0x8, scoped, tag = 'scoped memory for vector_quantizer_forward.1']
    #allocation4 [shape = 'u8[262144]{0}', space=vmem, size = 0x40000, scoped, tag = 'output window, operand 1']
    #allocation5 [shape = 's32[2]{0}', space=sflag, size = 0x8, scoped, tag = 'scoped memory for vector_quantizer_forward.1']
    %12 = vsyncpa [#allocation3], 0
    %s13 = scalar_lea.sflag [#allocation3], 1
    %14 = vsyncpa %s13, 0
    %15 = vsyncpa [#allocation5], 0
    %s16 = scalar_lea.sflag [#allocation5], 1
    %17 = vsyncpa %s16, 0
    loop: start=0, step=1, limit=4
    $region2: #{vector_quantizer_forward.1} parent=1 // loop_pre_header
      _
    $region3: #{vector_quantizer_forward.1} parent=1 // loop_header
      %s19 = sphi 0, %s23
      %p20 = scmp.ge.s32.totalorder %s19, 4
      %s26 = sphi 0, %s38
      %s27 = sphi 0, %s34
      %s28 = sphi 0, %s26
      %s29 = sphi 0, %s27
      %s30 = sphi 0, %s28
      %s31 = sphi 0, %s29
      %s43 = sphi 0, %s45
      %s46 = sphi 0, %s43
      %s47 = sphi 0, %s46
      %s63 = sphi 0, %s47
      %s67 = sphi 0, %s67
      %s69 = sphi 0, %s67
      %s70 = sphi 0, %s69
      %s84 = sphi 0, %s70
      %s88 = sphi 0, %s88
      %s90 = sphi 0, %s88
      %s91 = sphi 0, %s90
      %s105 = sphi 0, %s91
      %s113 = sphi 0, %s115
      %s116 = sphi 0, %s113
      %s117 = sphi 0, %s116
      %s133 = sphi 0, %s117
      %s141 = sphi 0, %s143
      %s144 = sphi 0, %s141
      %s145 = sphi 0, %s144
      %s161 = sphi 0, %s145
      %s167 = sphi 0, %s169
      %s170 = sphi 0, %s167
      %s171 = sphi 0, %s170
      %s187 = sphi 0, %s171
      %s193 = sphi 0, %s195
      %s196 = sphi 0, %s193
      %s197 = sphi 0, %s196
      %s213 = sphi 0, %s197
    $region4: #{vector_quantizer_forward.1} parent=1 // loop_header_branch
      %22 = sbr.rel (%p20) target = $region8
    $region5: #{vector_quantizer_forward.1} parent=1 // loop_body
      %s24 = ssub.s32 %s19, 1
      %s25 = ssub.s32 %s19, 2
      %s32 = sadd.s32 1, %s27
      %p33 = scmp.ge.s32.totalorder %s32, 1
      %s34 = scalar_select %p33, 0, %s32
      %s35 = sadd.s32 1, %s26
      %s36 = scalar_select %p33, %s35, %s26
      %p37 = scmp.ge.s32.totalorder %s36, 2
      %s38 = scalar_select %p37, 0, %s36
      %s39 = ssub.s32 %s26, %s38
      %s40 = ssub.s32 %s27, %s34
      %s41 = sor.u32 %s39, %s40
      %p42 = scmp.eq.s32.totalorder %s41, 0
      %s44 = sadd.s32 %s43, 1
      %s45 = scalar_select %p42, %s43, %s44
      %p48 = pneg %p42
      %p49 = scmp.eq.s32.totalorder %s19, 1
      %p50 = por %p48, %p49
      %p51 = scmp.ne.s32.totalorder %s43, %s46
      %p52 = scmp.eq.s32.totalorder %s19, 0
      %p53 = por %p51, %p52
      %p54 = scmp.ne.s32.totalorder %s43, %s46
      %p55 = scmp.eq.s32.totalorder %s24, 1
      %p56 = por %p54, %p55
      %p57 = scmp.ne.s32.totalorder %s46, %s47
      %p58 = scmp.eq.s32.totalorder %s24, 0
      %p59 = por %p57, %p58
      %p60 = scmp.ne.s32.totalorder %s46, %s47
      %p61 = scmp.eq.s32.totalorder %s25, 1
      %p62 = por %p60, %p61
      %p64 = scmp.ne.s32.totalorder %s47, %s63
      %p65 = scmp.eq.s32.totalorder %s25, 0
      %p66 = por %p64, %p65
      %s68 = sadd.s32 %s67, 1
      %p71 = scmp.eq.s32.totalorder %s19, 1
      %p72 = scmp.ne.s32.totalorder %s67, %s69
      %p73 = scmp.eq.s32.totalorder %s19, 0
      %p74 = por %p72, %p73
      %p75 = scmp.ne.s32.totalorder %s67, %s69
      %p76 = scmp.eq.s32.totalorder %s24, 1
      %p77 = por %p75, %p76
      %p78 = scmp.ne.s32.totalorder %s69, %s70
      %p79 = scmp.eq.s32.totalorder %s24, 0
      %p80 = por %p78, %p79
      %p81 = scmp.ne.s32.totalorder %s69, %s70
      %p82 = scmp.eq.s32.totalorder %s25, 1
      %p83 = por %p81, %p82
      %p85 = scmp.ne.s32.totalorder %s70, %s84
      %p86 = scmp.eq.s32.totalorder %s25, 0
      %p87 = por %p85, %p86
      %s89 = sadd.s32 %s88, 1
      %p92 = scmp.eq.s32.totalorder %s19, 1
      %p93 = scmp.ne.s32.totalorder %s88, %s90
      %p94 = scmp.eq.s32.totalorder %s19, 0
      %p95 = por %p93, %p94
      %p96 = scmp.ne.s32.totalorder %s88, %s90
      %p97 = scmp.eq.s32.totalorder %s24, 1
      %p98 = por %p96, %p97
      %p99 = scmp.ne.s32.totalorder %s90, %s91
      %p100 = scmp.eq.s32.totalorder %s24, 0
      %p101 = por %p99, %p100
      %p102 = scmp.ne.s32.totalorder %s90, %s91
      %p103 = scmp.eq.s32.totalorder %s25, 1
      %p104 = por %p102, %p103
      %p106 = scmp.ne.s32.totalorder %s91, %s105
      %p107 = scmp.eq.s32.totalorder %s25, 0
      %p108 = por %p106, %p107
      %s109 = ssub.s32 %s26, %s38
      %s110 = ssub.s32 %s27, %s34
      %s111 = sor.u32 %s109, %s110
      %p112 = scmp.eq.s32.totalorder %s111, 0
      %s114 = sadd.s32 %s113, 1
      %s115 = scalar_select %p112, %s113, %s114
      %p118 = pneg %p112
      %p119 = scmp.eq.s32.totalorder %s19, 1
      %p120 = por %p118, %p119
      %p121 = scmp.ne.s32.totalorder %s113, %s116
      %p122 = scmp.eq.s32.totalorder %s19, 0
      %p123 = por %p121, %p122
      %p124 = scmp.ne.s32.totalorder %s113, %s116
      %p125 = scmp.eq.s32.totalorder %s24, 1
      %p126 = por %p124, %p125
      %p127 = scmp.ne.s32.totalorder %s116, %s117
      %p128 = scmp.eq.s32.totalorder %s24, 0
      %p129 = por %p127, %p128
      %p130 = scmp.ne.s32.totalorder %s116, %s117
      %p131 = scmp.eq.s32.totalorder %s25, 1
      %p132 = por %p130, %p131
      %p134 = scmp.ne.s32.totalorder %s117, %s133
      %p135 = scmp.eq.s32.totalorder %s25, 0
      %p136 = por %p134, %p135
      %s137 = ssub.s32 %s26, %s38
      %s138 = ssub.s32 %s27, %s34
      %s139 = sor.u32 %s137, %s138
      %p140 = scmp.eq.s32.totalorder %s139, 0
      %s142 = sadd.s32 %s141, 1
      %s143 = scalar_select %p140, %s141, %s142
      %p146 = pneg %p140
      %p147 = scmp.eq.s32.totalorder %s19, 1
      %p148 = por %p146, %p147
      %p149 = scmp.ne.s32.totalorder %s141, %s144
      %p150 = scmp.eq.s32.totalorder %s19, 0
      %p151 = por %p149, %p150
      %p152 = scmp.ne.s32.totalorder %s141, %s144
      %p153 = scmp.eq.s32.totalorder %s24, 1
      %p154 = por %p152, %p153
      %p155 = scmp.ne.s32.totalorder %s144, %s145
      %p156 = scmp.eq.s32.totalorder %s24, 0
      %p157 = por %p155, %p156
      %p158 = scmp.ne.s32.totalorder %s144, %s145
      %p159 = scmp.eq.s32.totalorder %s25, 1
      %p160 = por %p158, %p159
      %p162 = scmp.ne.s32.totalorder %s145, %s161
      %p163 = scmp.eq.s32.totalorder %s25, 0
      %p164 = por %p162, %p163
      %s165 = ssub.s32 %s26, %s38
      %p166 = scmp.eq.s32.totalorder %s165, 0
      %s168 = sadd.s32 %s167, 1
      %s169 = scalar_select %p166, %s167, %s168
      %p172 = pneg %p166
      %p173 = scmp.eq.s32.totalorder %s19, 1
      %p174 = por %p172, %p173
      %p175 = scmp.ne.s32.totalorder %s167, %s170
      %p176 = scmp.eq.s32.totalorder %s19, 0
      %p177 = por %p175, %p176
      %p178 = scmp.ne.s32.totalorder %s167, %s170
      %p179 = scmp.eq.s32.totalorder %s24, 1
      %p180 = por %p178, %p179
      %p181 = scmp.ne.s32.totalorder %s170, %s171
      %p182 = scmp.eq.s32.totalorder %s24, 0
      %p183 = por %p181, %p182
      %p184 = scmp.ne.s32.totalorder %s170, %s171
      %p185 = scmp.eq.s32.totalorder %s25, 1
      %p186 = por %p184, %p185
      %p188 = scmp.ne.s32.totalorder %s171, %s187
      %p189 = scmp.eq.s32.totalorder %s25, 0
      %p190 = por %p188, %p189
      %s191 = ssub.s32 %s26, %s38
      %p192 = scmp.eq.s32.totalorder %s191, 0
      %s194 = sadd.s32 %s193, 1
      %s195 = scalar_select %p192, %s193, %s194
      %p198 = pneg %p192
      %p199 = scmp.eq.s32.totalorder %s19, 1
      %p200 = por %p198, %p199
      %p201 = scmp.ne.s32.totalorder %s193, %s196
      %p202 = scmp.eq.s32.totalorder %s19, 0
      %p203 = por %p201, %p202
      %p204 = scmp.ne.s32.totalorder %s193, %s196
      %p205 = scmp.eq.s32.totalorder %s24, 1
      %p206 = por %p204, %p205
      %p207 = scmp.ne.s32.totalorder %s196, %s197
      %p208 = scmp.eq.s32.totalorder %s24, 0
      %p209 = por %p207, %p208
      %p210 = scmp.ne.s32.totalorder %s196, %s197
      %p211 = scmp.eq.s32.totalorder %s25, 1
      %p212 = por %p210, %p211
      %p214 = scmp.ne.s32.totalorder %s197, %s213
      %p215 = scmp.eq.s32.totalorder %s25, 0
      %p216 = por %p214, %p215
      %p217 = scmp.le.s32.totalorder 1, %s19
      %p218 = scmp.lt.s32.totalorder %s19, 3
      %p219 = pnand %p217, %p218
      %p220 = pneg %p219
      // Predicated region
      $region9: #{vector_quantizer_forward.1} parent=5 // pred_check
        _
      $region10: #{vector_quantizer_forward.1} parent=5 // pred_check_branch
        %222 = sbr.rel (%p219) target = $region12
      $region11: #{vector_quantizer_forward.1} parent=5 // pred_region
        %s223 = ssub.s32 %s19, 1
        // Predicated region
        $region13: #{vector_quantizer_forward.1} parent=11 // pred_check
          %p224 = pneg %p80
        $region14: #{vector_quantizer_forward.1} parent=11 // pred_check_branch
          %226 = sbr.rel (%p224) target = $region16
        $region15: #{vector_quantizer_forward.1} parent=11 // pred_region
          _
        $region16: #{vector_quantizer_forward.1} parent=11 // pred_fallthru
          _
        // Predicated region
        $region17: #{vector_quantizer_forward.1} parent=11 // pred_check
          %p227 = pneg %p101
        $region18: #{vector_quantizer_forward.1} parent=11 // pred_check_branch
          %229 = sbr.rel (%p227) target = $region20
        $region19: #{vector_quantizer_forward.1} parent=11 // pred_region
          _
        $region20: #{vector_quantizer_forward.1} parent=11 // pred_fallthru
          _
      $region12: #{vector_quantizer_forward.1} parent=5 // pred_fallthru
        _
      %p230 = scmp.lt.s32.totalorder %s19, 2
      // Predicated region
      $region21: #{vector_quantizer_forward.1} parent=5 // pred_check
        %p231 = pneg %p230
      $region22: #{vector_quantizer_forward.1} parent=5 // pred_check_branch
        %233 = sbr.rel (%p231) target = $region24
      $region23: #{vector_quantizer_forward.1} parent=5 // pred_region
        // Predicated region
        $region25: #{vector_quantizer_forward.1} parent=23 // pred_check
          %p234 = pneg %p53
        $region26: #{vector_quantizer_forward.1} parent=23 // pred_check_branch
          %236 = sbr.rel (%p234) target = $region28
        $region27: #{vector_quantizer_forward.1} parent=23 // pred_region
          %s237 = smul.u32 8, %s27
          %p238 = scmp.lt.s32.totalorder %s26, 1
          %s239 = scalar_select %p238, %s26, 1
          %p240 = scmp.lt.s32.totalorder %s237, 7
          %s241 = scalar_select %p240, %s237, 7
          %s242 = smul.addr %s239, 8
          %s243 = sadd.s32 %s241, %s242
          %s244 = smul.addr %s243, 8
          %s245 = scalar_lea.vmem %s0, %s244
          %s246 = smul.u32 8, %s27
        $region28: #{vector_quantizer_forward.1} parent=23 // pred_fallthru
          _
      $region24: #{vector_quantizer_forward.1} parent=5 // pred_fallthru
        _
      %p247 = scmp.le.s32.totalorder 1, %s19
      %p248 = scmp.lt.s32.totalorder %s19, 3
      %p249 = pnand %p247, %p248
      %p250 = pneg %p249
      // Predicated region
      $region29: #{vector_quantizer_forward.1} parent=5 // pred_check
        _
      $region30: #{vector_quantizer_forward.1} parent=5 // pred_check_branch
        %252 = sbr.rel (%p249) target = $region32
      $region31: #{vector_quantizer_forward.1} parent=5 // pred_region
        %s253 = ssub.s32 %s19, 1
        %s254 = smul.u32 8, %s29
        %p255 = scmp.lt.s32.totalorder %s28, 1
        %s256 = scalar_select %p255, %s28, 1
        %p257 = scmp.lt.s32.totalorder %s254, 7
        %s258 = scalar_select %p257, %s254, 7
        %s259 = smul.addr %s256, 8
        %s260 = sadd.s32 %s258, %s259
        %s261 = smul.addr %s260, 8
        %s262 = scalar_lea.vmem %s0, %s261
        %p263 = pneg %p59
        %p264 = pneg %p56
        %p265 = pneg %p80
        %p266 = pneg %p77
        %p267 = pneg %p101
        %p268 = pneg %p98
        %p269 = pneg %p129
        %p270 = pneg %p126
        %s271 = sand.u32 %s116, 1
        %s272 = scalar_lea.sflag [#allocation3], %s271
        %s273 = sand.u32 %s116, 1
        %s274 = smul.addr %s273, 64
        %s275 = scalar_lea.vmem [#allocation2], %s274
        %p276 = pneg %p157
        %p277 = pneg %p154
        %s278 = sand.u32 %s144, 1
        %s279 = scalar_lea.sflag [#allocation5], %s278
        %s280 = sand.u32 %s144, 1
        %s281 = smul.addr %s280, 256
        %s282 = scalar_lea.vmem [#allocation4], %s281
        %p283 = pneg %p183
        %p284 = pneg %p180
        %p285 = scmp.lt.s32.totalorder %s28, 1
        %s286 = scalar_select %p285, %s28, 1
        %s287 = scalar_lea.vmem %s5, %s286
        %p288 = pneg %p209
        %p289 = pneg %p206
        %p290 = scmp.lt.s32.totalorder %s28, 1
        %s291 = scalar_select %p290, %s28, 1
        %s292 = smul.addr %s291, 4
        %s293 = scalar_lea.vmem %s6, %s292
        %s294 = smul.u32 8, %s29
        %p295 = scmp.lt.s32.totalorder %s28, 1
        %s296 = scalar_select %p295, %s28, 1
        %p297 = scmp.lt.s32.totalorder %s294, 7
        %s298 = scalar_select %p297, %s294, 7
        %s299 = smul.addr %s296, 8
        %s300 = sadd.s32 %s298, %s299
        %s301 = smul.addr %s300, 8
        %s302 = scalar_lea.vmem %s0, %s301
        %s303 = smul.u32 8, %s29
        %s304 = smul.u32 8, %s29
        %s305 = smul.u32 8, %s29
        %p306 = scmp.lt.s32.totalorder %s28, 1
        %s307 = scalar_select %p306, %s28, 1
        %s308 = scalar_lea.vmem %s5, %s307
        %p309 = scmp.lt.s32.totalorder %s28, 1
        %s310 = scalar_select %p309, %s28, 1
        %s311 = smul.addr %s310, 4
        %s312 = scalar_lea.vmem %s6, %s311
        %p313 = scmp.eq.s32.totalorder %s29, 0
        // Predicated region
        $region33: #{vector_quantizer_forward.1} parent=31 // pred_check
          %p314 = pneg %p313
        $region34: #{vector_quantizer_forward.1} parent=31 // pred_check_branch
          %316 = sbr.rel (%p314) target = $region36
        $region35: #{vector_quantizer_forward.1} parent=31 // pred_region
          %vm317 = vcmask 516096
          %318 = vst.msk [vmem:[%s308] sm:$0x1] %vm317, 0.0
          %v319 = vlaneseq
          %vm320 = vcmp.ge.s32.totalorder %v319, 0
          %vm321 = vcmp.lt.s32.totalorder %v319, 512
          %vm322 = vmand %vm320, %vm321
          %323 = vst.msk [vmem:[%s312] sm:$0xf] %vm322, 0.0
        $region36: #{vector_quantizer_forward.1} parent=31 // pred_fallthru
          _
        %v324 = vld [vmem:[%s302] sm:$0xff]
        %v325 = vld [vmem:[%s302 + $0x8] sm:$0xff]
        %v326 = vld [vmem:[%s302 + $0x10] sm:$0xff]
        %v327 = vld [vmem:[%s302 + $0x18] sm:$0xff]
        %v328 = vld [vmem:[%s302 + $0x20] sm:$0xff]
        %v329 = vld [vmem:[%s302 + $0x28] sm:$0xff]
        %v330 = vld [vmem:[%s302 + $0x30] sm:$0xff]
        %v331 = vld [vmem:[%s302 + $0x38] sm:$0xff]
        %v332 = vld [vmem:[%s2] sm:$0xff]
        %v333 = vld [vmem:[%s2 + $0x8] sm:$0xff]
        %v334 = vld [vmem:[%s2 + $0x10] sm:$0xff]
        %v335 = vld [vmem:[%s2 + $0x18] sm:$0xff]
        %v336 = vld [vmem:[%s2 + $0x20] sm:$0xff]
        %v337 = vld [vmem:[%s2 + $0x28] sm:$0xff]
        %v338 = vld [vmem:[%s2 + $0x30] sm:$0xff]
        %v339 = vld [vmem:[%s2 + $0x38] sm:$0xff]
        %v340 = vld [vmem:[%s2 + $0x40] sm:$0xff]
        %v341 = vld [vmem:[%s2 + $0x48] sm:$0xff]
        %v342 = vld [vmem:[%s2 + $0x50] sm:$0xff]
        %v343 = vld [vmem:[%s2 + $0x58] sm:$0xff]
        %v344 = vld [vmem:[%s2 + $0x60] sm:$0xff]
        %v345 = vld [vmem:[%s2 + $0x68] sm:$0xff]
        %v346 = vld [vmem:[%s2 + $0x70] sm:$0xff]
        %v347 = vld [vmem:[%s2 + $0x78] sm:$0xff]
        %v348 = vld [vmem:[%s2 + $0x80] sm:$0xff]
        %v349 = vld [vmem:[%s2 + $0x88] sm:$0xff]
        %v350 = vld [vmem:[%s2 + $0x90] sm:$0xff]
        %v351 = vld [vmem:[%s2 + $0x98] sm:$0xff]
        %v352 = vld [vmem:[%s2 + $0xa0] sm:$0xff]
        %v353 = vld [vmem:[%s2 + $0xa8] sm:$0xff]
        %v354 = vld [vmem:[%s2 + $0xb0] sm:$0xff]
        %v355 = vld [vmem:[%s2 + $0xb8] sm:$0xff]
        %v356 = vld [vmem:[%s2 + $0xc0] sm:$0xff]
        %v357 = vld [vmem:[%s2 + $0xc8] sm:$0xff]
        %v358 = vld [vmem:[%s2 + $0xd0] sm:$0xff]
        %v359 = vld [vmem:[%s2 + $0xd8] sm:$0xff]
        %v360 = vld [vmem:[%s2 + $0xe0] sm:$0xff]
        %v361 = vld [vmem:[%s2 + $0xe8] sm:$0xff]
        %v362 = vld [vmem:[%s2 + $0xf0] sm:$0xff]
        %v363 = vld [vmem:[%s2 + $0xf8] sm:$0xff]
        %v364 = vld [vmem:[%s2 + $0x100] sm:$0xff]
        %v365 = vld [vmem:[%s2 + $0x108] sm:$0xff]
        %v366 = vld [vmem:[%s2 + $0x110] sm:$0xff]
        %v367 = vld [vmem:[%s2 + $0x118] sm:$0xff]
        %v368 = vld [vmem:[%s2 + $0x120] sm:$0xff]
        %v369 = vld [vmem:[%s2 + $0x128] sm:$0xff]
        %v370 = vld [vmem:[%s2 + $0x130] sm:$0xff]
        %v371 = vld [vmem:[%s2 + $0x138] sm:$0xff]
        %v372 = vld [vmem:[%s2 + $0x140] sm:$0xff]
        %v373 = vld [vmem:[%s2 + $0x148] sm:$0xff]
        %v374 = vld [vmem:[%s2 + $0x150] sm:$0xff]
        %v375 = vld [vmem:[%s2 + $0x158] sm:$0xff]
        %v376 = vld [vmem:[%s2 + $0x160] sm:$0xff]
        %v377 = vld [vmem:[%s2 + $0x168] sm:$0xff]
        %v378 = vld [vmem:[%s2 + $0x170] sm:$0xff]
        %v379 = vld [vmem:[%s2 + $0x178] sm:$0xff]
        %v380 = vld [vmem:[%s2 + $0x180] sm:$0xff]
        %v381 = vld [vmem:[%s2 + $0x188] sm:$0xff]
        %v382 = vld [vmem:[%s2 + $0x190] sm:$0xff]
        %v383 = vld [vmem:[%s2 + $0x198] sm:$0xff]
        %v384 = vld [vmem:[%s2 + $0x1a0] sm:$0xff]
        %v385 = vld [vmem:[%s2 + $0x1a8] sm:$0xff]
        %v386 = vld [vmem:[%s2 + $0x1b0] sm:$0xff]
        %v387 = vld [vmem:[%s2 + $0x1b8] sm:$0xff]
        %v388 = vld [vmem:[%s2 + $0x1c0] sm:$0xff]
        %v389 = vld [vmem:[%s2 + $0x1c8] sm:$0xff]
        %v390 = vld [vmem:[%s2 + $0x1d0] sm:$0xff]
        %v391 = vld [vmem:[%s2 + $0x1d8] sm:$0xff]
        %v392 = vld [vmem:[%s2 + $0x1e0] sm:$0xff]
        %v393 = vld [vmem:[%s2 + $0x1e8] sm:$0xff]
        %v394 = vld [vmem:[%s2 + $0x1f0] sm:$0xff]
        %v395 = vld [vmem:[%s2 + $0x1f8] sm:$0xff]
        %v396 = vld [vmem:[%s1] sm:$0xf]
        %v397 = vmul.f32 %v324, -2.0
        %v398 = vmul.f32 %v325, -2.0
        %v399 = vmul.f32 %v326, -2.0
        %v400 = vmul.f32 %v327, -2.0
        %v401 = vmul.f32 %v328, -2.0
        %v402 = vmul.f32 %v329, -2.0
        %v403 = vmul.f32 %v330, -2.0
        %v404 = vmul.f32 %v331, -2.0
        %v406 = vlaneseq
        %v407 = vshrl.u32 %v406, 7
        %v408 = vsub.s32 0, %v407
        %v409 = vrot.slane %v396, %v408
        %v410 = vlaneseq
        %v411 = vshrl.u32 %v410, 7
        %v412 = vsub.s32 1, %v411
        %v413 = vrot.slane %v396, %v412
        %v414 = vlaneseq
        %v415 = vshrl.u32 %v414, 7
        %v416 = vsub.s32 2, %v415
        %v417 = vrot.slane %v396, %v416
        %v418 = vlaneseq
        %v419 = vshrl.u32 %v418, 7
        %v420 = vsub.s32 3, %v419
        %v421 = vrot.slane %v396, %v420
        %vm426 = vcmask 523264
        %v428 = vsel %vm426, %v397, 0
        %v431 = vsel %vm426, %v398, 0
        %v434 = vsel %vm426, %v399, 0
        %v437 = vsel %vm426, %v400, 0
        %v440 = vsel %vm426, %v401, 0
        %v443 = vsel %vm426, %v402, 0
        %v446 = vsel %vm426, %v403, 0
        %v449 = vsel %vm426, %v404, 0
        %v452 = vsel %vm426, %v332, 0
        %v455 = vsel %vm426, %v333, 0
        %v458 = vsel %vm426, %v334, 0
        %v461 = vsel %vm426, %v335, 0
        %v464 = vsel %vm426, %v336, 0
        %v467 = vsel %vm426, %v337, 0
        %v470 = vsel %vm426, %v338, 0
        %v473 = vsel %vm426, %v339, 0
        %v476 = vsel %vm426, %v340, 0
        %v479 = vsel %vm426, %v341, 0
        %v482 = vsel %vm426, %v342, 0
        %v485 = vsel %vm426, %v343, 0
        %v488 = vsel %vm426, %v344, 0
        %v491 = vsel %vm426, %v345, 0
        %v494 = vsel %vm426, %v346, 0
        %v497 = vsel %vm426, %v347, 0
        %v500 = vsel %vm426, %v348, 0
        %v503 = vsel %vm426, %v349, 0
        %v506 = vsel %vm426, %v350, 0
        %v509 = vsel %vm426, %v351, 0
        %v512 = vsel %vm426, %v352, 0
        %v515 = vsel %vm426, %v353, 0
        %v518 = vsel %vm426, %v354, 0
        %v521 = vsel %vm426, %v355, 0
        %v524 = vsel %vm426, %v356, 0
        %v527 = vsel %vm426, %v357, 0
        %v530 = vsel %vm426, %v358, 0
        %v533 = vsel %vm426, %v359, 0
        %v536 = vsel %vm426, %v360, 0
        %v539 = vsel %vm426, %v361, 0
        %v542 = vsel %vm426, %v362, 0
        %v545 = vsel %vm426, %v363, 0
        %v548 = vsel %vm426, %v364, 0
        %v551 = vsel %vm426, %v365, 0
        %v554 = vsel %vm426, %v366, 0
        %v557 = vsel %vm426, %v367, 0
        %v560 = vsel %vm426, %v368, 0
        %v563 = vsel %vm426, %v369, 0
        %v566 = vsel %vm426, %v370, 0
        %v569 = vsel %vm426, %v371, 0
        %v572 = vsel %vm426, %v372, 0
        %v575 = vsel %vm426, %v373, 0
        %v578 = vsel %vm426, %v374, 0
        %v581 = vsel %vm426, %v375, 0
        %v584 = vsel %vm426, %v376, 0
        %v587 = vsel %vm426, %v377, 0
        %v590 = vsel %vm426, %v378, 0
        %v593 = vsel %vm426, %v379, 0
        %v596 = vsel %vm426, %v380, 0
        %v599 = vsel %vm426, %v381, 0
        %v602 = vsel %vm426, %v382, 0
        %v605 = vsel %vm426, %v383, 0
        %v608 = vsel %vm426, %v384, 0
        %v611 = vsel %vm426, %v385, 0
        %v614 = vsel %vm426, %v386, 0
        %v617 = vsel %vm426, %v387, 0
        %v620 = vsel %vm426, %v388, 0
        %v623 = vsel %vm426, %v389, 0
        %v626 = vsel %vm426, %v390, 0
        %v629 = vsel %vm426, %v391, 0
        %v632 = vsel %vm426, %v392, 0
        %v635 = vsel %vm426, %v393, 0
        %v638 = vsel %vm426, %v394, 0
        %v641 = vsel %vm426, %v395, 0
        %643 = vmatprep.subr.mxu0 0.0
        %644 = vmatpush1.xpose.msra.mxu0 %v497
        %645 = vmatprep.subr.mxu0 0.0
        %646 = vmatpush1.xpose.msra.mxu0 %v494
        %647 = vmatprep.subr.mxu0 0.0
        %648 = vmatpush1.xpose.msra.mxu0 %v491
        %649 = vmatprep.subr.mxu0 0.0
        %650 = vmatpush1.xpose.msra.mxu0 %v488
        %651 = vmatprep.subr.mxu0 0.0
        %652 = vmatpush1.xpose.msra.mxu0 %v485
        %653 = vmatprep.subr.mxu0 0.0
        %654 = vmatpush1.xpose.msra.mxu0 %v482
        %655 = vmatprep.subr.mxu0 0.0
        %656 = vmatpush1.xpose.msra.mxu0 %v479
        %657 = vmatprep.subr.mxu0 0.0
        %658 = vmatpush1.xpose.msra.mxu0 %v476
        %659 = vmatprep.subr.mxu0 0.0
        %660 = vmatpush1.xpose.msra.mxu0 %v473
        %661 = vmatprep.subr.mxu0 0.0
        %662 = vmatpush1.xpose.msra.mxu0 %v470
        %663 = vmatprep.subr.mxu0 0.0
        %664 = vmatpush1.xpose.msra.mxu0 %v467
        %665 = vmatprep.subr.mxu0 0.0
        %666 = vmatpush1.xpose.msra.mxu0 %v464
        %667 = vmatprep.subr.mxu0 0.0
        %668 = vmatpush1.xpose.msra.mxu0 %v461
        %669 = vmatprep.subr.mxu0 0.0
        %670 = vmatpush1.xpose.msra.mxu0 %v458
        %671 = vmatprep.subr.mxu0 0.0
        %672 = vmatpush1.xpose.msra.mxu0 %v455
        %673 = vmatprep.subr.mxu0 0.0
        %674 = vmatpush1.xpose.msra.mxu0 %v452
        %675 = vmatprep.subr.mxu0 0.0
        %676 = vmatpush2.xpose.msra.mxu0 %v545
        %677 = vmatprep.subr.mxu0 0.0
        %678 = vmatpush2.xpose.msra.mxu0 %v542
        %679 = vmatprep.subr.mxu0 0.0
        %680 = vmatpush2.xpose.msra.mxu0 %v539
        %681 = vmatprep.subr.mxu0 0.0
        %682 = vmatpush2.xpose.msra.mxu0 %v536
        %683 = vmatprep.subr.mxu0 0.0
        %684 = vmatpush2.xpose.msra.mxu0 %v533
        %685 = vmatprep.subr.mxu0 0.0
        %686 = vmatpush2.xpose.msra.mxu0 %v530
        %687 = vmatprep.subr.mxu0 0.0
        %688 = vmatpush2.xpose.msra.mxu0 %v527
        %689 = vmatprep.subr.mxu0 0.0
        %690 = vmatpush2.xpose.msra.mxu0 %v524
        %691 = vmatprep.subr.mxu0 0.0
        %692 = vmatpush2.xpose.msra.mxu0 %v521
        %693 = vmatprep.subr.mxu0 0.0
        %694 = vmatpush2.xpose.msra.mxu0 %v518
        %695 = vmatprep.subr.mxu0 0.0
        %696 = vmatpush2.xpose.msra.mxu0 %v515
        %697 = vmatprep.subr.mxu0 0.0
        %698 = vmatpush2.xpose.msra.mxu0 %v512
        %699 = vmatprep.subr.mxu0 0.0
        %700 = vmatpush2.xpose.msra.mxu0 %v509
        %701 = vmatprep.subr.mxu0 0.0
        %702 = vmatpush2.xpose.msra.mxu0 %v506
        %703 = vmatprep.subr.mxu0 0.0
        %704 = vmatpush2.xpose.msra.mxu0 %v503
        %705 = vmatprep.subr.mxu0 0.0
        %706 = vmatpush2.xpose.msra.mxu0 %v500
        %707 = vmatprep.mubr.f32.mxu0 0.0
        %708 = vmatmul.mubr.f32.gmra.mxu0 %v428
        %v709 = vpop.f32.mrf.mxu0
        %v710 = vadd.f32 %v409, %v709
        %v711 = vpop.f32.mrf.mxu0
        %v712 = vadd.f32 %v413, %v711
        %713 = vmatprep.mubr.f32.mxu0 0.0
        %714 = vmatmul.mubr.f32.gmra.mxu0 %v431
        %v715 = vpop.f32.mrf.mxu0
        %v716 = vadd.f32 %v409, %v715
        %v717 = vpop.f32.mrf.mxu0
        %v718 = vadd.f32 %v413, %v717
        %719 = vmatprep.mubr.f32.mxu0 0.0
        %720 = vmatmul.mubr.f32.gmra.mxu0 %v434
        %v721 = vpop.f32.mrf.mxu0
        %v722 = vadd.f32 %v409, %v721
        %v723 = vpop.f32.mrf.mxu0
        %v724 = vadd.f32 %v413, %v723
        %725 = vmatprep.mubr.f32.mxu0 0.0
        %726 = vmatmul.mubr.f32.gmra.mxu0 %v437
        %v727 = vpop.f32.mrf.mxu0
        %v728 = vadd.f32 %v409, %v727
        %v729 = vpop.f32.mrf.mxu0
        %v730 = vadd.f32 %v413, %v729
        %731 = vmatprep.mubr.f32.mxu0 0.0
        %732 = vmatmul.mubr.f32.gmra.mxu0 %v440
        %v733 = vpop.f32.mrf.mxu0
        %v734 = vadd.f32 %v409, %v733
        %v735 = vpop.f32.mrf.mxu0
        %v736 = vadd.f32 %v413, %v735
        %737 = vmatprep.mubr.f32.mxu0 0.0
        %738 = vmatmul.mubr.f32.gmra.mxu0 %v443
        %v739 = vpop.f32.mrf.mxu0
        %v740 = vadd.f32 %v409, %v739
        %v741 = vpop.f32.mrf.mxu0
        %v742 = vadd.f32 %v413, %v741
        %743 = vmatprep.mubr.f32.mxu0 0.0
        %744 = vmatmul.mubr.f32.gmra.mxu0 %v446
        %v745 = vpop.f32.mrf.mxu0
        %v746 = vadd.f32 %v409, %v745
        %v747 = vpop.f32.mrf.mxu0
        %v748 = vadd.f32 %v413, %v747
        %749 = vmatprep.mubr.f32.mxu0 0.0
        %750 = vmatmul.mubr.f32.gmra.mxu0 %v449
        %v751 = vpop.f32.mrf.mxu0
        %v752 = vadd.f32 %v409, %v751
        %v753 = vpop.f32.mrf.mxu0
        %v754 = vadd.f32 %v413, %v753
        %755 = vdwg.mxu0
        %756 = vmatprep.subr.mxu0 0.0
        %757 = vmatpush1.xpose.msra.mxu0 %v593
        %758 = vmatprep.subr.mxu0 0.0
        %759 = vmatpush1.xpose.msra.mxu0 %v590
        %760 = vmatprep.subr.mxu0 0.0
        %761 = vmatpush1.xpose.msra.mxu0 %v587
        %762 = vmatprep.subr.mxu0 0.0
        %763 = vmatpush1.xpose.msra.mxu0 %v584
        %764 = vmatprep.subr.mxu0 0.0
        %765 = vmatpush1.xpose.msra.mxu0 %v581
        %766 = vmatprep.subr.mxu0 0.0
        %767 = vmatpush1.xpose.msra.mxu0 %v578
        %768 = vmatprep.subr.mxu0 0.0
        %769 = vmatpush1.xpose.msra.mxu0 %v575
        %770 = vmatprep.subr.mxu0 0.0
        %771 = vmatpush1.xpose.msra.mxu0 %v572
        %772 = vmatprep.subr.mxu0 0.0
        %773 = vmatpush1.xpose.msra.mxu0 %v569
        %774 = vmatprep.subr.mxu0 0.0
        %775 = vmatpush1.xpose.msra.mxu0 %v566
        %776 = vmatprep.subr.mxu0 0.0
        %777 = vmatpush1.xpose.msra.mxu0 %v563
        %778 = vmatprep.subr.mxu0 0.0
        %779 = vmatpush1.xpose.msra.mxu0 %v560
        %780 = vmatprep.subr.mxu0 0.0
        %781 = vmatpush1.xpose.msra.mxu0 %v557
        %782 = vmatprep.subr.mxu0 0.0
        %783 = vmatpush1.xpose.msra.mxu0 %v554
        %784 = vmatprep.subr.mxu0 0.0
        %785 = vmatpush1.xpose.msra.mxu0 %v551
        %786 = vmatprep.subr.mxu0 0.0
        %787 = vmatpush1.xpose.msra.mxu0 %v548
        %788 = vmatprep.subr.mxu0 0.0
        %789 = vmatpush2.xpose.msra.mxu0 %v641
        %790 = vmatprep.subr.mxu0 0.0
        %791 = vmatpush2.xpose.msra.mxu0 %v638
        %792 = vmatprep.subr.mxu0 0.0
        %793 = vmatpush2.xpose.msra.mxu0 %v635
        %794 = vmatprep.subr.mxu0 0.0
        %795 = vmatpush2.xpose.msra.mxu0 %v632
        %796 = vmatprep.subr.mxu0 0.0
        %797 = vmatpush2.xpose.msra.mxu0 %v629
        %798 = vmatprep.subr.mxu0 0.0
        %799 = vmatpush2.xpose.msra.mxu0 %v626
        %800 = vmatprep.subr.mxu0 0.0
        %801 = vmatpush2.xpose.msra.mxu0 %v623
        %802 = vmatprep.subr.mxu0 0.0
        %803 = vmatpush2.xpose.msra.mxu0 %v620
        %804 = vmatprep.subr.mxu0 0.0
        %805 = vmatpush2.xpose.msra.mxu0 %v617
        %806 = vmatprep.subr.mxu0 0.0
        %807 = vmatpush2.xpose.msra.mxu0 %v614
        %808 = vmatprep.subr.mxu0 0.0
        %809 = vmatpush2.xpose.msra.mxu0 %v611
        %810 = vmatprep.subr.mxu0 0.0
        %811 = vmatpush2.xpose.msra.mxu0 %v608
        %812 = vmatprep.subr.mxu0 0.0
        %813 = vmatpush2.xpose.msra.mxu0 %v605
        %814 = vmatprep.subr.mxu0 0.0
        %815 = vmatpush2.xpose.msra.mxu0 %v602
        %816 = vmatprep.subr.mxu0 0.0
        %817 = vmatpush2.xpose.msra.mxu0 %v599
        %818 = vmatprep.subr.mxu0 0.0
        %819 = vmatpush2.xpose.msra.mxu0 %v596
        %820 = vmatprep.mubr.f32.mxu0 0.0
        %821 = vmatmul.mubr.f32.gmra.mxu0 %v428
        %v822 = vpop.f32.mrf.mxu0
        %v823 = vadd.f32 %v417, %v822
        %v824 = vpop.f32.mrf.mxu0
        %v825 = vadd.f32 %v421, %v824
        %826 = vmatprep.mubr.f32.mxu0 0.0
        %827 = vmatmul.mubr.f32.gmra.mxu0 %v431
        %v828 = vpop.f32.mrf.mxu0
        %v829 = vadd.f32 %v417, %v828
        %v830 = vpop.f32.mrf.mxu0
        %v831 = vadd.f32 %v421, %v830
        %832 = vmatprep.mubr.f32.mxu0 0.0
        %833 = vmatmul.mubr.f32.gmra.mxu0 %v434
        %v834 = vpop.f32.mrf.mxu0
        %v835 = vadd.f32 %v417, %v834
        %v836 = vpop.f32.mrf.mxu0
        %v837 = vadd.f32 %v421, %v836
        %838 = vmatprep.mubr.f32.mxu0 0.0
        %839 = vmatmul.mubr.f32.gmra.mxu0 %v437
        %v840 = vpop.f32.mrf.mxu0
        %v841 = vadd.f32 %v417, %v840
        %v842 = vpop.f32.mrf.mxu0
        %v843 = vadd.f32 %v421, %v842
        %844 = vmatprep.mubr.f32.mxu0 0.0
        %845 = vmatmul.mubr.f32.gmra.mxu0 %v440
        %v846 = vpop.f32.mrf.mxu0
        %v847 = vadd.f32 %v417, %v846
        %v848 = vpop.f32.mrf.mxu0
        %v849 = vadd.f32 %v421, %v848
        %850 = vmatprep.mubr.f32.mxu0 0.0
        %851 = vmatmul.mubr.f32.gmra.mxu0 %v443
        %v852 = vpop.f32.mrf.mxu0
        %v853 = vadd.f32 %v417, %v852
        %v854 = vpop.f32.mrf.mxu0
        %v855 = vadd.f32 %v421, %v854
        %856 = vmatprep.mubr.f32.mxu0 0.0
        %857 = vmatmul.mubr.f32.gmra.mxu0 %v446
        %v858 = vpop.f32.mrf.mxu0
        %v859 = vadd.f32 %v417, %v858
        %v860 = vpop.f32.mrf.mxu0
        %v861 = vadd.f32 %v421, %v860
        %862 = vmatprep.mubr.f32.mxu0 0.0
        %863 = vmatmul.mubr.f32.gmra.mxu0 %v449
        %v864 = vpop.f32.mrf.mxu0
        %v865 = vadd.f32 %v417, %v864
        %v866 = vpop.f32.mrf.mxu0
        %v867 = vadd.f32 %v421, %v866
        %868 = vdwg.mxu0
        %v869 = vlaneseq
        %v870 = vand.u32 %v869, 127
        %v871 = vadd.s32 %v870, 128
        %v872 = vadd.s32 %v870, 256
        %v873 = vadd.s32 %v870, 384
        %v874 = vmin.f32 %v710, %v712
        %v875 = vmin.f32 %v874, %v823
        %v876 = vmin.f32 %v875, %v825
        %877 = vmin.xlane.f32.xlu0 %v876
        %v878 = vpop.xlane.xlu0 %877
        %v879 = vmin.f32 %v716, %v718
        %v880 = vmin.f32 %v879, %v829
        %v881 = vmin.f32 %v880, %v831
        %882 = vmin.xlane.f32.xlu0 %v881
        %v883 = vpop.xlane.xlu0 %882
        %v884 = vmin.f32 %v722, %v724
        %v885 = vmin.f32 %v884, %v835
        %v886 = vmin.f32 %v885, %v837
        %887 = vmin.xlane.f32.xlu0 %v886
        %v888 = vpop.xlane.xlu0 %887
        %v889 = vmin.f32 %v728, %v730
        %v890 = vmin.f32 %v889, %v841
        %v891 = vmin.f32 %v890, %v843
        %892 = vmin.xlane.f32.xlu0 %v891
        %v893 = vpop.xlane.xlu0 %892
        %v894 = vmin.f32 %v734, %v736
        %v895 = vmin.f32 %v894, %v847
        %v896 = vmin.f32 %v895, %v849
        %897 = vmin.xlane.f32.xlu0 %v896
        %v898 = vpop.xlane.xlu0 %897
        %v899 = vmin.f32 %v740, %v742
        %v900 = vmin.f32 %v899, %v853
        %v901 = vmin.f32 %v900, %v855
        %902 = vmin.xlane.f32.xlu0 %v901
        %v903 = vpop.xlane.xlu0 %902
        %v904 = vmin.f32 %v746, %v748
        %v905 = vmin.f32 %v904, %v859
        %v906 = vmin.f32 %v905, %v861
        %907 = vmin.xlane.f32.xlu0 %v906
        %v908 = vpop.xlane.xlu0 %907
        %v909 = vmin.f32 %v752, %v754
        %v910 = vmin.f32 %v909, %v865
        %v911 = vmin.f32 %v910, %v867
        %912 = vmin.xlane.f32.xlu0 %v911
        %v913 = vpop.xlane.xlu0 %912
        %vm914 = vcmp.le.f32.partialorder %v710, %v878
        %vm915 = vcmp.le.f32.partialorder %v712, %v878
        %vm916 = vcmp.le.f32.partialorder %v823, %v878
        %vm917 = vcmp.le.f32.partialorder %v825, %v878
        %vm918 = vcmp.le.f32.partialorder %v716, %v883
        %vm919 = vcmp.le.f32.partialorder %v718, %v883
        %vm920 = vcmp.le.f32.partialorder %v829, %v883
        %vm921 = vcmp.le.f32.partialorder %v831, %v883
        %vm922 = vcmp.le.f32.partialorder %v722, %v888
        %vm923 = vcmp.le.f32.partialorder %v724, %v888
        %vm924 = vcmp.le.f32.partialorder %v835, %v888
        %vm925 = vcmp.le.f32.partialorder %v837, %v888
        %vm926 = vcmp.le.f32.partialorder %v728, %v893
        %vm927 = vcmp.le.f32.partialorder %v730, %v893
        %vm928 = vcmp.le.f32.partialorder %v841, %v893
        %vm929 = vcmp.le.f32.partialorder %v843, %v893
        %vm930 = vcmp.le.f32.partialorder %v734, %v898
        %vm931 = vcmp.le.f32.partialorder %v736, %v898
        %vm932 = vcmp.le.f32.partialorder %v847, %v898
        %vm933 = vcmp.le.f32.partialorder %v849, %v898
        %vm934 = vcmp.le.f32.partialorder %v740, %v903
        %vm935 = vcmp.le.f32.partialorder %v742, %v903
        %vm936 = vcmp.le.f32.partialorder %v853, %v903
        %vm937 = vcmp.le.f32.partialorder %v855, %v903
        %vm938 = vcmp.le.f32.partialorder %v746, %v908
        %vm939 = vcmp.le.f32.partialorder %v748, %v908
        %vm940 = vcmp.le.f32.partialorder %v859, %v908
        %vm941 = vcmp.le.f32.partialorder %v861, %v908
        %vm942 = vcmp.le.f32.partialorder %v752, %v913
        %vm943 = vcmp.le.f32.partialorder %v754, %v913
        %vm944 = vcmp.le.f32.partialorder %v865, %v913
        %vm945 = vcmp.le.f32.partialorder %v867, %v913
        %v946 = vsel %vm914, %v870, 512
        %v947 = vsel %vm915, %v871, 512
        %v948 = vsel %vm916, %v872, 512
        %v949 = vsel %vm917, %v873, 512
        %v950 = vsel %vm918, %v870, 512
        %v951 = vsel %vm919, %v871, 512
        %v952 = vsel %vm920, %v872, 512
        %v953 = vsel %vm921, %v873, 512
        %v954 = vsel %vm922, %v870, 512
        %v955 = vsel %vm923, %v871, 512
        %v956 = vsel %vm924, %v872, 512
        %v957 = vsel %vm925, %v873, 512
        %v958 = vsel %vm926, %v870, 512
        %v959 = vsel %vm927, %v871, 512
        %v960 = vsel %vm928, %v872, 512
        %v961 = vsel %vm929, %v873, 512
        %v962 = vsel %vm930, %v870, 512
        %v963 = vsel %vm931, %v871, 512
        %v964 = vsel %vm932, %v872, 512
        %v965 = vsel %vm933, %v873, 512
        %v966 = vsel %vm934, %v870, 512
        %v967 = vsel %vm935, %v871, 512
        %v968 = vsel %vm936, %v872, 512
        %v969 = vsel %vm937, %v873, 512
        %v970 = vsel %vm938, %v870, 512
        %v971 = vsel %vm939, %v871, 512
        %v972 = vsel %vm940, %v872, 512
        %v973 = vsel %vm941, %v873, 512
        %v974 = vsel %vm942, %v870, 512
        %v975 = vsel %vm943, %v871, 512
        %v976 = vsel %vm944, %v872, 512
        %v977 = vsel %vm945, %v873, 512
        %vm978 = vcmp.lt.s32.totalorder %v946, %v947
        %v979 = vsel %vm978, %v946, %v947
        %vm980 = vcmp.lt.s32.totalorder %v979, %v948
        %v981 = vsel %vm980, %v979, %v948
        %vm982 = vcmp.lt.s32.totalorder %v981, %v949
        %v983 = vsel %vm982, %v981, %v949
        %v984 = vand.u32 %v983, 65535
        %v985 = vshra.s32 %v983, 16
        %v986 = vcvt.s32.f32 %v984
        %v987 = vcvt.s32.f32 %v985
        %988 = vmin.xlane.f32.xlu0 %v987
        %v989 = vpop.xlane.xlu0 %988
        %vm990 = vcmp.eq.f32.partialorder %v987, %v989
        %v991 = vsel %vm990, %v986, inf
        %992 = vmin.xlane.f32.xlu0 %v991
        %v993 = vpop.xlane.xlu0 %992
        %v994 = vcvt.f32.s32 %v993
        %v995 = vcvt.f32.s32 %v989
        %v996 = vshll.u32 %v995, 16
        %v997 = vadd.s32 %v996, %v994
        %vm998 = vcmp.lt.s32.totalorder %v950, %v951
        %v999 = vsel %vm998, %v950, %v951
        %vm1000 = vcmp.lt.s32.totalorder %v999, %v952
        %v1001 = vsel %vm1000, %v999, %v952
        %vm1002 = vcmp.lt.s32.totalorder %v1001, %v953
        %v1003 = vsel %vm1002, %v1001, %v953
        %v1004 = vand.u32 %v1003, 65535
        %v1005 = vshra.s32 %v1003, 16
        %v1006 = vcvt.s32.f32 %v1004
        %v1007 = vcvt.s32.f32 %v1005
        %1008 = vmin.xlane.f32.xlu0 %v1007
        %v1009 = vpop.xlane.xlu0 %1008
        %vm1010 = vcmp.eq.f32.partialorder %v1007, %v1009
        %v1011 = vsel %vm1010, %v1006, inf
        %1012 = vmin.xlane.f32.xlu0 %v1011
        %v1013 = vpop.xlane.xlu0 %1012
        %v1014 = vcvt.f32.s32 %v1013
        %v1015 = vcvt.f32.s32 %v1009
        %v1016 = vshll.u32 %v1015, 16
        %v1017 = vadd.s32 %v1016, %v1014
        %vm1018 = vcmp.lt.s32.totalorder %v954, %v955
        %v1019 = vsel %vm1018, %v954, %v955
        %vm1020 = vcmp.lt.s32.totalorder %v1019, %v956
        %v1021 = vsel %vm1020, %v1019, %v956
        %vm1022 = vcmp.lt.s32.totalorder %v1021, %v957
        %v1023 = vsel %vm1022, %v1021, %v957
        %v1024 = vand.u32 %v1023, 65535
        %v1025 = vshra.s32 %v1023, 16
        %v1026 = vcvt.s32.f32 %v1024
        %v1027 = vcvt.s32.f32 %v1025
        %1028 = vmin.xlane.f32.xlu0 %v1027
        %v1029 = vpop.xlane.xlu0 %1028
        %vm1030 = vcmp.eq.f32.partialorder %v1027, %v1029
        %v1031 = vsel %vm1030, %v1026, inf
        %1032 = vmin.xlane.f32.xlu0 %v1031
        %v1033 = vpop.xlane.xlu0 %1032
        %v1034 = vcvt.f32.s32 %v1033
        %v1035 = vcvt.f32.s32 %v1029
        %v1036 = vshll.u32 %v1035, 16
        %v1037 = vadd.s32 %v1036, %v1034
        %vm1038 = vcmp.lt.s32.totalorder %v958, %v959
        %v1039 = vsel %vm1038, %v958, %v959
        %vm1040 = vcmp.lt.s32.totalorder %v1039, %v960
        %v1041 = vsel %vm1040, %v1039, %v960
        %vm1042 = vcmp.lt.s32.totalorder %v1041, %v961
        %v1043 = vsel %vm1042, %v1041, %v961
        %v1044 = vand.u32 %v1043, 65535
        %v1045 = vshra.s32 %v1043, 16
        %v1046 = vcvt.s32.f32 %v1044
        %v1047 = vcvt.s32.f32 %v1045
        %1048 = vmin.xlane.f32.xlu0 %v1047
        %v1049 = vpop.xlane.xlu0 %1048
        %vm1050 = vcmp.eq.f32.partialorder %v1047, %v1049
        %v1051 = vsel %vm1050, %v1046, inf
        %1052 = vmin.xlane.f32.xlu0 %v1051
        %v1053 = vpop.xlane.xlu0 %1052
        %v1054 = vcvt.f32.s32 %v1053
        %v1055 = vcvt.f32.s32 %v1049
        %v1056 = vshll.u32 %v1055, 16
        %v1057 = vadd.s32 %v1056, %v1054
        %vm1058 = vcmp.lt.s32.totalorder %v962, %v963
        %v1059 = vsel %vm1058, %v962, %v963
        %vm1060 = vcmp.lt.s32.totalorder %v1059, %v964
        %v1061 = vsel %vm1060, %v1059, %v964
        %vm1062 = vcmp.lt.s32.totalorder %v1061, %v965
        %v1063 = vsel %vm1062, %v1061, %v965
        %v1064 = vand.u32 %v1063, 65535
        %v1065 = vshra.s32 %v1063, 16
        %v1066 = vcvt.s32.f32 %v1064
        %v1067 = vcvt.s32.f32 %v1065
        %1068 = vmin.xlane.f32.xlu0 %v1067
        %v1069 = vpop.xlane.xlu0 %1068
        %vm1070 = vcmp.eq.f32.partialorder %v1067, %v1069
        %v1071 = vsel %vm1070, %v1066, inf
        %1072 = vmin.xlane.f32.xlu0 %v1071
        %v1073 = vpop.xlane.xlu0 %1072
        %v1074 = vcvt.f32.s32 %v1073
        %v1075 = vcvt.f32.s32 %v1069
        %v1076 = vshll.u32 %v1075, 16
        %v1077 = vadd.s32 %v1076, %v1074
        %vm1078 = vcmp.lt.s32.totalorder %v966, %v967
        %v1079 = vsel %vm1078, %v966, %v967
        %vm1080 = vcmp.lt.s32.totalorder %v1079, %v968
        %v1081 = vsel %vm1080, %v1079, %v968
        %vm1082 = vcmp.lt.s32.totalorder %v1081, %v969
        %v1083 = vsel %vm1082, %v1081, %v969
        %v1084 = vand.u32 %v1083, 65535
        %v1085 = vshra.s32 %v1083, 16
        %v1086 = vcvt.s32.f32 %v1084
        %v1087 = vcvt.s32.f32 %v1085
        %1088 = vmin.xlane.f32.xlu0 %v1087
        %v1089 = vpop.xlane.xlu0 %1088
        %vm1090 = vcmp.eq.f32.partialorder %v1087, %v1089
        %v1091 = vsel %vm1090, %v1086, inf
        %1092 = vmin.xlane.f32.xlu0 %v1091
        %v1093 = vpop.xlane.xlu0 %1092
        %v1094 = vcvt.f32.s32 %v1093
        %v1095 = vcvt.f32.s32 %v1089
        %v1096 = vshll.u32 %v1095, 16
        %v1097 = vadd.s32 %v1096, %v1094
        %vm1098 = vcmp.lt.s32.totalorder %v970, %v971
        %v1099 = vsel %vm1098, %v970, %v971
        %vm1100 = vcmp.lt.s32.totalorder %v1099, %v972
        %v1101 = vsel %vm1100, %v1099, %v972
        %vm1102 = vcmp.lt.s32.totalorder %v1101, %v973
        %v1103 = vsel %vm1102, %v1101, %v973
        %v1104 = vand.u32 %v1103, 65535
        %v1105 = vshra.s32 %v1103, 16
        %v1106 = vcvt.s32.f32 %v1104
        %v1107 = vcvt.s32.f32 %v1105
        %1108 = vmin.xlane.f32.xlu0 %v1107
        %v1109 = vpop.xlane.xlu0 %1108
        %vm1110 = vcmp.eq.f32.partialorder %v1107, %v1109
        %v1111 = vsel %vm1110, %v1106, inf
        %1112 = vmin.xlane.f32.xlu0 %v1111
        %v1113 = vpop.xlane.xlu0 %1112
        %v1114 = vcvt.f32.s32 %v1113
        %v1115 = vcvt.f32.s32 %v1109
        %v1116 = vshll.u32 %v1115, 16
        %v1117 = vadd.s32 %v1116, %v1114
        %vm1118 = vcmp.lt.s32.totalorder %v974, %v975
        %v1119 = vsel %vm1118, %v974, %v975
        %vm1120 = vcmp.lt.s32.totalorder %v1119, %v976
        %v1121 = vsel %vm1120, %v1119, %v976
        %vm1122 = vcmp.lt.s32.totalorder %v1121, %v977
        %v1123 = vsel %vm1122, %v1121, %v977
        %v1124 = vand.u32 %v1123, 65535
        %v1125 = vshra.s32 %v1123, 16
        %v1126 = vcvt.s32.f32 %v1124
        %v1127 = vcvt.s32.f32 %v1125
        %1128 = vmin.xlane.f32.xlu0 %v1127
        %v1129 = vpop.xlane.xlu0 %1128
        %vm1130 = vcmp.eq.f32.partialorder %v1127, %v1129
        %v1131 = vsel %vm1130, %v1126, inf
        %1132 = vmin.xlane.f32.xlu0 %v1131
        %v1133 = vpop.xlane.xlu0 %1132
        %v1134 = vcvt.f32.s32 %v1133
        %v1135 = vcvt.f32.s32 %v1129
        %v1136 = vshll.u32 %v1135, 16
        %v1137 = vadd.s32 %v1136, %v1134
        %vm1138 = vcmp.eq.s32.totalorder %v870, %v997
        %vm1139 = vcmp.eq.s32.totalorder %v871, %v997
        %vm1140 = vcmp.eq.s32.totalorder %v872, %v997
        %vm1141 = vcmp.eq.s32.totalorder %v873, %v997
        %vm1142 = vcmp.eq.s32.totalorder %v870, %v1017
        %vm1143 = vcmp.eq.s32.totalorder %v871, %v1017
        %vm1144 = vcmp.eq.s32.totalorder %v872, %v1017
        %vm1145 = vcmp.eq.s32.totalorder %v873, %v1017
        %vm1146 = vcmp.eq.s32.totalorder %v870, %v1037
        %vm1147 = vcmp.eq.s32.totalorder %v871, %v1037
        %vm1148 = vcmp.eq.s32.totalorder %v872, %v1037
        %vm1149 = vcmp.eq.s32.totalorder %v873, %v1037
        %vm1150 = vcmp.eq.s32.totalorder %v870, %v1057
        %vm1151 = vcmp.eq.s32.totalorder %v871, %v1057
        %vm1152 = vcmp.eq.s32.totalorder %v872, %v1057
        %vm1153 = vcmp.eq.s32.totalorder %v873, %v1057
        %vm1154 = vcmp.eq.s32.totalorder %v870, %v1077
        %vm1155 = vcmp.eq.s32.totalorder %v871, %v1077
        %vm1156 = vcmp.eq.s32.totalorder %v872, %v1077
        %vm1157 = vcmp.eq.s32.totalorder %v873, %v1077
        %vm1158 = vcmp.eq.s32.totalorder %v870, %v1097
        %vm1159 = vcmp.eq.s32.totalorder %v871, %v1097
        %vm1160 = vcmp.eq.s32.totalorder %v872, %v1097
        %vm1161 = vcmp.eq.s32.totalorder %v873, %v1097
        %vm1162 = vcmp.eq.s32.totalorder %v870, %v1117
        %vm1163 = vcmp.eq.s32.totalorder %v871, %v1117
        %vm1164 = vcmp.eq.s32.totalorder %v872, %v1117
        %vm1165 = vcmp.eq.s32.totalorder %v873, %v1117
        %vm1166 = vcmp.eq.s32.totalorder %v870, %v1137
        %vm1167 = vcmp.eq.s32.totalorder %v871, %v1137
        %vm1168 = vcmp.eq.s32.totalorder %v872, %v1137
        %vm1169 = vcmp.eq.s32.totalorder %v873, %v1137
        %v1170 = vsel %vm1138, 1, 0
        %v1171 = vsel %vm1139, 1, 0
        %v1172 = vsel %vm1140, 1, 0
        %v1173 = vsel %vm1141, 1, 0
        %v1174 = vsel %vm1142, 1, 0
        %v1175 = vsel %vm1143, 1, 0
        %v1176 = vsel %vm1144, 1, 0
        %v1177 = vsel %vm1145, 1, 0
        %v1178 = vsel %vm1146, 1, 0
        %v1179 = vsel %vm1147, 1, 0
        %v1180 = vsel %vm1148, 1, 0
        %v1181 = vsel %vm1149, 1, 0
        %v1182 = vsel %vm1150, 1, 0
        %v1183 = vsel %vm1151, 1, 0
        %v1184 = vsel %vm1152, 1, 0
        %v1185 = vsel %vm1153, 1, 0
        %v1186 = vsel %vm1154, 1, 0
        %v1187 = vsel %vm1155, 1, 0
        %v1188 = vsel %vm1156, 1, 0
        %v1189 = vsel %vm1157, 1, 0
        %v1190 = vsel %vm1158, 1, 0
        %v1191 = vsel %vm1159, 1, 0
        %v1192 = vsel %vm1160, 1, 0
        %v1193 = vsel %vm1161, 1, 0
        %v1194 = vsel %vm1162, 1, 0
        %v1195 = vsel %vm1163, 1, 0
        %v1196 = vsel %vm1164, 1, 0
        %v1197 = vsel %vm1165, 1, 0
        %v1198 = vsel %vm1166, 1, 0
        %v1199 = vsel %vm1167, 1, 0
        %v1200 = vsel %vm1168, 1, 0
        %v1201 = vsel %vm1169, 1, 0
        %v1202 = vcvt.s32.f32 %v1170
        %v1203 = vcvt.s32.f32 %v1171
        %v1204 = vcvt.s32.f32 %v1172
        %v1205 = vcvt.s32.f32 %v1173
        %v1206 = vcvt.s32.f32 %v1174
        %v1207 = vcvt.s32.f32 %v1175
        %v1208 = vcvt.s32.f32 %v1176
        %v1209 = vcvt.s32.f32 %v1177
        %v1210 = vcvt.s32.f32 %v1178
        %v1211 = vcvt.s32.f32 %v1179
        %v1212 = vcvt.s32.f32 %v1180
        %v1213 = vcvt.s32.f32 %v1181
        %v1214 = vcvt.s32.f32 %v1182
        %v1215 = vcvt.s32.f32 %v1183
        %v1216 = vcvt.s32.f32 %v1184
        %v1217 = vcvt.s32.f32 %v1185
        %v1218 = vcvt.s32.f32 %v1186
        %v1219 = vcvt.s32.f32 %v1187
        %v1220 = vcvt.s32.f32 %v1188
        %v1221 = vcvt.s32.f32 %v1189
        %v1222 = vcvt.s32.f32 %v1190
        %v1223 = vcvt.s32.f32 %v1191
        %v1224 = vcvt.s32.f32 %v1192
        %v1225 = vcvt.s32.f32 %v1193
        %v1226 = vcvt.s32.f32 %v1194
        %v1227 = vcvt.s32.f32 %v1195
        %v1228 = vcvt.s32.f32 %v1196
        %v1229 = vcvt.s32.f32 %v1197
        %v1230 = vcvt.s32.f32 %v1198
        %v1231 = vcvt.s32.f32 %v1199
        %v1232 = vcvt.s32.f32 %v1200
        %v1233 = vcvt.s32.f32 %v1201
        %1234 = vst [vmem:[%s282] sm:$0xff] %v1202
        %1235 = vst [vmem:[%s282 + $0x8] sm:$0xff] %v1203
        %1236 = vst [vmem:[%s282 + $0x10] sm:$0xff] %v1204
        %1237 = vst [vmem:[%s282 + $0x18] sm:$0xff] %v1205
        %1238 = vst [vmem:[%s282 + $0x20] sm:$0xff] %v1206
        %1239 = vst [vmem:[%s282 + $0x28] sm:$0xff] %v1207
        %1240 = vst [vmem:[%s282 + $0x30] sm:$0xff] %v1208
        %1241 = vst [vmem:[%s282 + $0x38] sm:$0xff] %v1209
        %1242 = vst [vmem:[%s282 + $0x40] sm:$0xff] %v1210
        %1243 = vst [vmem:[%s282 + $0x48] sm:$0xff] %v1211
        %1244 = vst [vmem:[%s282 + $0x50] sm:$0xff] %v1212
        %1245 = vst [vmem:[%s282 + $0x58] sm:$0xff] %v1213
        %1246 = vst [vmem:[%s282 + $0x60] sm:$0xff] %v1214
        %1247 = vst [vmem:[%s282 + $0x68] sm:$0xff] %v1215
        %1248 = vst [vmem:[%s282 + $0x70] sm:$0xff] %v1216
        %1249 = vst [vmem:[%s282 + $0x78] sm:$0xff] %v1217
        %1250 = vst [vmem:[%s282 + $0x80] sm:$0xff] %v1218
        %1251 = vst [vmem:[%s282 + $0x88] sm:$0xff] %v1219
        %1252 = vst [vmem:[%s282 + $0x90] sm:$0xff] %v1220
        %1253 = vst [vmem:[%s282 + $0x98] sm:$0xff] %v1221
        %1254 = vst [vmem:[%s282 + $0xa0] sm:$0xff] %v1222
        %1255 = vst [vmem:[%s282 + $0xa8] sm:$0xff] %v1223
        %1256 = vst [vmem:[%s282 + $0xb0] sm:$0xff] %v1224
        %1257 = vst [vmem:[%s282 + $0xb8] sm:$0xff] %v1225
        %1258 = vst [vmem:[%s282 + $0xc0] sm:$0xff] %v1226
        %1259 = vst [vmem:[%s282 + $0xc8] sm:$0xff] %v1227
        %1260 = vst [vmem:[%s282 + $0xd0] sm:$0xff] %v1228
        %1261 = vst [vmem:[%s282 + $0xd8] sm:$0xff] %v1229
        %1262 = vst [vmem:[%s282 + $0xe0] sm:$0xff] %v1230
        %1263 = vst [vmem:[%s282 + $0xe8] sm:$0xff] %v1231
        %1264 = vst [vmem:[%s282 + $0xf0] sm:$0xff] %v1232
        %1265 = vst [vmem:[%s282 + $0xf8] sm:$0xff] %v1233
        %1266 = vmatprep.subr.mxu0 0.0
        %1267 = vmatpush1.msra.mxu0 %v347
        %1268 = vmatprep.subr.mxu0 0.0
        %1269 = vmatpush1.msra.mxu0 %v346
        %1270 = vmatprep.subr.mxu0 0.0
        %1271 = vmatpush1.msra.mxu0 %v345
        %1272 = vmatprep.subr.mxu0 0.0
        %1273 = vmatpush1.msra.mxu0 %v344
        %1274 = vmatprep.subr.mxu0 0.0
        %1275 = vmatpush1.msra.mxu0 %v343
        %1276 = vmatprep.subr.mxu0 0.0
        %1277 = vmatpush1.msra.mxu0 %v342
        %1278 = vmatprep.subr.mxu0 0.0
        %1279 = vmatpush1.msra.mxu0 %v341
        %1280 = vmatprep.subr.mxu0 0.0
        %1281 = vmatpush1.msra.mxu0 %v340
        %1282 = vmatprep.subr.mxu0 0.0
        %1283 = vmatpush1.msra.mxu0 %v339
        %1284 = vmatprep.subr.mxu0 0.0
        %1285 = vmatpush1.msra.mxu0 %v338
        %1286 = vmatprep.subr.mxu0 0.0
        %1287 = vmatpush1.msra.mxu0 %v337
        %1288 = vmatprep.subr.mxu0 0.0
        %1289 = vmatpush1.msra.mxu0 %v336
        %1290 = vmatprep.subr.mxu0 0.0
        %1291 = vmatpush1.msra.mxu0 %v335
        %1292 = vmatprep.subr.mxu0 0.0
        %1293 = vmatpush1.msra.mxu0 %v334
        %1294 = vmatprep.subr.mxu0 0.0
        %1295 = vmatpush1.msra.mxu0 %v333
        %1296 = vmatprep.subr.mxu0 0.0
        %1297 = vmatpush1.msra.mxu0 %v332
        %1298 = vmatprep.subr.mxu0 0.0
        %1299 = vmatpush2.msra.mxu0 %v363
        %1300 = vmatprep.subr.mxu0 0.0
        %1301 = vmatpush2.msra.mxu0 %v362
        %1302 = vmatprep.subr.mxu0 0.0
        %1303 = vmatpush2.msra.mxu0 %v361
        %1304 = vmatprep.subr.mxu0 0.0
        %1305 = vmatpush2.msra.mxu0 %v360
        %1306 = vmatprep.subr.mxu0 0.0
        %1307 = vmatpush2.msra.mxu0 %v359
        %1308 = vmatprep.subr.mxu0 0.0
        %1309 = vmatpush2.msra.mxu0 %v358
        %1310 = vmatprep.subr.mxu0 0.0
        %1311 = vmatpush2.msra.mxu0 %v357
        %1312 = vmatprep.subr.mxu0 0.0
        %1313 = vmatpush2.msra.mxu0 %v356
        %1314 = vmatprep.subr.mxu0 0.0
        %1315 = vmatpush2.msra.mxu0 %v355
        %1316 = vmatprep.subr.mxu0 0.0
        %1317 = vmatpush2.msra.mxu0 %v354
        %1318 = vmatprep.subr.mxu0 0.0
        %1319 = vmatpush2.msra.mxu0 %v353
        %1320 = vmatprep.subr.mxu0 0.0
        %1321 = vmatpush2.msra.mxu0 %v352
        %1322 = vmatprep.subr.mxu0 0.0
        %1323 = vmatpush2.msra.mxu0 %v351
        %1324 = vmatprep.subr.mxu0 0.0
        %1325 = vmatpush2.msra.mxu0 %v350
        %1326 = vmatprep.subr.mxu0 0.0
        %1327 = vmatpush2.msra.mxu0 %v349
        %1328 = vmatprep.subr.mxu0 0.0
        %1329 = vmatpush2.msra.mxu0 %v348
        %1330 = vmatprep.mubr.f32.mxu0 %v1203
        %1331 = vmatmul.mubr.f32.gmra.mxu0 %v1202
        %v1332 = vpop.f32.mrf.mxu0
        %v1333 = vadd.f32 0.0, %v1332
        %v1334 = vpop.f32.mrf.mxu0
        %1335 = vmatprep.mubr.f32.mxu0 %v1207
        %1336 = vmatmul.mubr.f32.gmra.mxu0 %v1206
        %v1337 = vpop.f32.mrf.mxu0
        %v1338 = vadd.f32 0.0, %v1337
        %v1339 = vpop.f32.mrf.mxu0
        %1340 = vmatprep.mubr.f32.mxu0 %v1211
        %1341 = vmatmul.mubr.f32.gmra.mxu0 %v1210
        %v1342 = vpop.f32.mrf.mxu0
        %v1343 = vadd.f32 0.0, %v1342
        %v1344 = vpop.f32.mrf.mxu0
        %1345 = vmatprep.mubr.f32.mxu0 %v1215
        %1346 = vmatmul.mubr.f32.gmra.mxu0 %v1214
        %v1347 = vpop.f32.mrf.mxu0
        %v1348 = vadd.f32 0.0, %v1347
        %v1349 = vpop.f32.mrf.mxu0
        %1350 = vmatprep.mubr.f32.mxu0 %v1219
        %1351 = vmatmul.mubr.f32.gmra.mxu0 %v1218
        %v1352 = vpop.f32.mrf.mxu0
        %v1353 = vadd.f32 0.0, %v1352
        %v1354 = vpop.f32.mrf.mxu0
        %1355 = vmatprep.mubr.f32.mxu0 %v1223
        %1356 = vmatmul.mubr.f32.gmra.mxu0 %v1222
        %v1357 = vpop.f32.mrf.mxu0
        %v1358 = vadd.f32 0.0, %v1357
        %v1359 = vpop.f32.mrf.mxu0
        %1360 = vmatprep.mubr.f32.mxu0 %v1227
        %1361 = vmatmul.mubr.f32.gmra.mxu0 %v1226
        %v1362 = vpop.f32.mrf.mxu0
        %v1363 = vadd.f32 0.0, %v1362
        %v1364 = vpop.f32.mrf.mxu0
        %1365 = vmatprep.mubr.f32.mxu0 %v1231
        %1366 = vmatmul.mubr.f32.gmra.mxu0 %v1230
        %v1367 = vpop.f32.mrf.mxu0
        %v1368 = vadd.f32 0.0, %v1367
        %v1369 = vpop.f32.mrf.mxu0
        %1370 = vdwg.mxu0
        %1371 = vmatprep.subr.mxu0 0.0
        %1372 = vmatpush1.msra.mxu0 %v379
        %1373 = vmatprep.subr.mxu0 0.0
        %1374 = vmatpush1.msra.mxu0 %v378
        %1375 = vmatprep.subr.mxu0 0.0
        %1376 = vmatpush1.msra.mxu0 %v377
        %1377 = vmatprep.subr.mxu0 0.0
        %1378 = vmatpush1.msra.mxu0 %v376
        %1379 = vmatprep.subr.mxu0 0.0
        %1380 = vmatpush1.msra.mxu0 %v375
        %1381 = vmatprep.subr.mxu0 0.0
        %1382 = vmatpush1.msra.mxu0 %v374
        %1383 = vmatprep.subr.mxu0 0.0
        %1384 = vmatpush1.msra.mxu0 %v373
        %1385 = vmatprep.subr.mxu0 0.0
        %1386 = vmatpush1.msra.mxu0 %v372
        %1387 = vmatprep.subr.mxu0 0.0
        %1388 = vmatpush1.msra.mxu0 %v371
        %1389 = vmatprep.subr.mxu0 0.0
        %1390 = vmatpush1.msra.mxu0 %v370
        %1391 = vmatprep.subr.mxu0 0.0
        %1392 = vmatpush1.msra.mxu0 %v369
        %1393 = vmatprep.subr.mxu0 0.0
        %1394 = vmatpush1.msra.mxu0 %v368
        %1395 = vmatprep.subr.mxu0 0.0
        %1396 = vmatpush1.msra.mxu0 %v367
        %1397 = vmatprep.subr.mxu0 0.0
        %1398 = vmatpush1.msra.mxu0 %v366
        %1399 = vmatprep.subr.mxu0 0.0
        %1400 = vmatpush1.msra.mxu0 %v365
        %1401 = vmatprep.subr.mxu0 0.0
        %1402 = vmatpush1.msra.mxu0 %v364
        %1403 = vmatprep.subr.mxu0 0.0
        %1404 = vmatpush2.msra.mxu0 %v395
        %1405 = vmatprep.subr.mxu0 0.0
        %1406 = vmatpush2.msra.mxu0 %v394
        %1407 = vmatprep.subr.mxu0 0.0
        %1408 = vmatpush2.msra.mxu0 %v393
        %1409 = vmatprep.subr.mxu0 0.0
        %1410 = vmatpush2.msra.mxu0 %v392
        %1411 = vmatprep.subr.mxu0 0.0
        %1412 = vmatpush2.msra.mxu0 %v391
        %1413 = vmatprep.subr.mxu0 0.0
        %1414 = vmatpush2.msra.mxu0 %v390
        %1415 = vmatprep.subr.mxu0 0.0
        %1416 = vmatpush2.msra.mxu0 %v389
        %1417 = vmatprep.subr.mxu0 0.0
        %1418 = vmatpush2.msra.mxu0 %v388
        %1419 = vmatprep.subr.mxu0 0.0
        %1420 = vmatpush2.msra.mxu0 %v387
        %1421 = vmatprep.subr.mxu0 0.0
        %1422 = vmatpush2.msra.mxu0 %v386
        %1423 = vmatprep.subr.mxu0 0.0
        %1424 = vmatpush2.msra.mxu0 %v385
        %1425 = vmatprep.subr.mxu0 0.0
        %1426 = vmatpush2.msra.mxu0 %v384
        %1427 = vmatprep.subr.mxu0 0.0
        %1428 = vmatpush2.msra.mxu0 %v383
        %1429 = vmatprep.subr.mxu0 0.0
        %1430 = vmatpush2.msra.mxu0 %v382
        %1431 = vmatprep.subr.mxu0 0.0
        %1432 = vmatpush2.msra.mxu0 %v381
        %1433 = vmatprep.subr.mxu0 0.0
        %1434 = vmatpush2.msra.mxu0 %v380
        %1435 = vmatprep.mubr.f32.mxu0 %v1205
        %1436 = vmatmul.mubr.f32.gmra.mxu0 %v1204
        %v1437 = vpop.f32.mrf.mxu0
        %v1438 = vadd.f32 %v1333, %v1437
        %v1439 = vpop.f32.mrf.mxu0
        %1440 = vmatprep.mubr.f32.mxu0 %v1209
        %1441 = vmatmul.mubr.f32.gmra.mxu0 %v1208
        %v1442 = vpop.f32.mrf.mxu0
        %v1443 = vadd.f32 %v1338, %v1442
        %v1444 = vpop.f32.mrf.mxu0
        %1445 = vmatprep.mubr.f32.mxu0 %v1213
        %1446 = vmatmul.mubr.f32.gmra.mxu0 %v1212
        %v1447 = vpop.f32.mrf.mxu0
        %v1448 = vadd.f32 %v1343, %v1447
        %v1449 = vpop.f32.mrf.mxu0
        %1450 = vmatprep.mubr.f32.mxu0 %v1217
        %1451 = vmatmul.mubr.f32.gmra.mxu0 %v1216
        %v1452 = vpop.f32.mrf.mxu0
        %v1453 = vadd.f32 %v1348, %v1452
        %v1454 = vpop.f32.mrf.mxu0
        %1455 = vmatprep.mubr.f32.mxu0 %v1221
        %1456 = vmatmul.mubr.f32.gmra.mxu0 %v1220
        %v1457 = vpop.f32.mrf.mxu0
        %v1458 = vadd.f32 %v1353, %v1457
        %v1459 = vpop.f32.mrf.mxu0
        %1460 = vmatprep.mubr.f32.mxu0 %v1225
        %1461 = vmatmul.mubr.f32.gmra.mxu0 %v1224
        %v1462 = vpop.f32.mrf.mxu0
        %v1463 = vadd.f32 %v1358, %v1462
        %v1464 = vpop.f32.mrf.mxu0
        %1465 = vmatprep.mubr.f32.mxu0 %v1229
        %1466 = vmatmul.mubr.f32.gmra.mxu0 %v1228
        %v1467 = vpop.f32.mrf.mxu0
        %v1468 = vadd.f32 %v1363, %v1467
        %v1469 = vpop.f32.mrf.mxu0
        %1470 = vmatprep.mubr.f32.mxu0 %v1233
        %1471 = vmatmul.mubr.f32.gmra.mxu0 %v1232
        %v1472 = vpop.f32.mrf.mxu0
        %v1473 = vadd.f32 %v1368, %v1472
        %v1474 = vpop.f32.mrf.mxu0
        %1475 = vdwg.mxu0
        %1476 = vst.msk [vmem:[%s275] sm:$0xff] %vm426, %v1438
        %1477 = vst.msk [vmem:[%s275 + $0x8] sm:$0xff] %vm426, %v1443
        %1478 = vst.msk [vmem:[%s275 + $0x10] sm:$0xff] %vm426, %v1448
        %1479 = vst.msk [vmem:[%s275 + $0x18] sm:$0xff] %vm426, %v1453
        %1480 = vst.msk [vmem:[%s275 + $0x20] sm:$0xff] %vm426, %v1458
        %1481 = vst.msk [vmem:[%s275 + $0x28] sm:$0xff] %vm426, %v1463
        %1482 = vst.msk [vmem:[%s275 + $0x30] sm:$0xff] %vm426, %v1468
        %1483 = vst.msk [vmem:[%s275 + $0x38] sm:$0xff] %vm426, %v1473
        %v1484 = vsub.f32 %v1438, %v324
        %v1485 = vsub.f32 %v1443, %v325
        %v1486 = vsub.f32 %v1448, %v326
        %v1487 = vsub.f32 %v1453, %v327
        %v1488 = vsub.f32 %v1458, %v328
        %v1489 = vsub.f32 %v1463, %v329
        %v1490 = vsub.f32 %v1468, %v330
        %v1491 = vsub.f32 %v1473, %v331
        %v1492 = vld [vmem:[%s308] sm:$0x1]
        %v1493 = vmul.f32 %v1484, %v1484
        %v1494 = vmul.f32 %v1485, %v1485
        %v1495 = vmul.f32 %v1486, %v1486
        %v1496 = vmul.f32 %v1487, %v1487
        %v1497 = vmul.f32 %v1488, %v1488
        %v1498 = vmul.f32 %v1489, %v1489
        %v1499 = vmul.f32 %v1490, %v1490
        %v1500 = vmul.f32 %v1491, %v1491
        %v1501 = vsel %vm426, %v1493, 0.0
        %v1502 = vsel %vm426, %v1494, 0.0
        %v1503 = vadd.f32 %v1501, %v1502
        %v1504 = vsel %vm426, %v1495, 0.0
        %v1505 = vadd.f32 %v1503, %v1504
        %v1506 = vsel %vm426, %v1496, 0.0
        %v1507 = vadd.f32 %v1505, %v1506
        %v1508 = vsel %vm426, %v1497, 0.0
        %v1509 = vadd.f32 %v1507, %v1508
        %v1510 = vsel %vm426, %v1498, 0.0
        %v1511 = vadd.f32 %v1509, %v1510
        %v1512 = vsel %vm426, %v1499, 0.0
        %v1513 = vadd.f32 %v1511, %v1512
        %v1514 = vsel %vm426, %v1500, 0.0
        %v1515 = vadd.f32 %v1513, %v1514
        %v1516 = vrot.slane %v1515, 4
        %v1517 = vadd.f32 %v1515, %v1516
        %v1518 = vrot.slane %v1517, 2
        %v1519 = vadd.f32 %v1517, %v1518
        %v1520 = vrot.slane %v1519, 1
        %v1521 = vadd.f32 %v1519, %v1520
        %v1522 = vadd.f32 %v1492, %v1521
        %vm1523 = vcmask 516096
        %1524 = vst.msk [vmem:[%s308] sm:$0x1] %vm1523, %v1522
        %v1525 = vld [vmem:[%s312] sm:$0xf]
        %v1526 = vadd.f32 %v1202, %v1206
        %v1527 = vadd.f32 %v1526, %v1210
        %v1528 = vadd.f32 %v1527, %v1214
        %v1529 = vadd.f32 %v1528, %v1218
        %v1530 = vadd.f32 %v1529, %v1222
        %v1531 = vadd.f32 %v1530, %v1226
        %v1532 = vadd.f32 %v1531, %v1230
        %v1533 = vrot.slane %v1532, 4
        %v1534 = vadd.f32 %v1532, %v1533
        %v1535 = vrot.slane %v1534, 2
        %v1536 = vadd.f32 %v1534, %v1535
        %v1537 = vrot.slane %v1536, 1
        %v1538 = vadd.f32 %v1536, %v1537
        %v1539 = vadd.f32 %v1203, %v1207
        %v1540 = vadd.f32 %v1539, %v1211
        %v1541 = vadd.f32 %v1540, %v1215
        %v1542 = vadd.f32 %v1541, %v1219
        %v1543 = vadd.f32 %v1542, %v1223
        %v1544 = vadd.f32 %v1543, %v1227
        %v1545 = vadd.f32 %v1544, %v1231
        %v1546 = vrot.slane %v1545, 4
        %v1547 = vadd.f32 %v1545, %v1546
        %v1548 = vrot.slane %v1547, 2
        %v1549 = vadd.f32 %v1547, %v1548
        %v1550 = vrot.slane %v1549, 1
        %v1551 = vadd.f32 %v1549, %v1550
        %v1552 = vadd.f32 %v1204, %v1208
        %v1553 = vadd.f32 %v1552, %v1212
        %v1554 = vadd.f32 %v1553, %v1216
        %v1555 = vadd.f32 %v1554, %v1220
        %v1556 = vadd.f32 %v1555, %v1224
        %v1557 = vadd.f32 %v1556, %v1228
        %v1558 = vadd.f32 %v1557, %v1232
        %v1559 = vrot.slane %v1558, 4
        %v1560 = vadd.f32 %v1558, %v1559
        %v1561 = vrot.slane %v1560, 2
        %v1562 = vadd.f32 %v1560, %v1561
        %v1563 = vrot.slane %v1562, 1
        %v1564 = vadd.f32 %v1562, %v1563
        %v1565 = vadd.f32 %v1205, %v1209
        %v1566 = vadd.f32 %v1565, %v1213
        %v1567 = vadd.f32 %v1566, %v1217
        %v1568 = vadd.f32 %v1567, %v1221
        %v1569 = vadd.f32 %v1568, %v1225
        %v1570 = vadd.f32 %v1569, %v1229
        %v1571 = vadd.f32 %v1570, %v1233
        %v1572 = vrot.slane %v1571, 4
        %v1573 = vadd.f32 %v1571, %v1572
        %v1574 = vrot.slane %v1573, 2
        %v1575 = vadd.f32 %v1573, %v1574
        %v1576 = vrot.slane %v1575, 1
        %v1577 = vadd.f32 %v1575, %v1576
        %v1582 = vcombine.low %v1538, %v1551
        %v1583 = vcombine.low %v1564, %v1577
        %v1585 = vunpack.c.l.s4 1966171168
        %v1586 = vunpack.c.0.s8 %v1585
        %v1587 = vlaneseq
        %v1588 = vshrl.u32 %v1587, 7
        %v1589 = vsub.s32 %v1586, %v1588
        %v1590 = vrot.slane %v1582, %v1589
        %v1592 = vunpack.c.l.s4 1966171168
        %v1593 = vunpack.c.0.s8 %v1592
        %v1594 = vlaneseq
        %v1595 = vshrl.u32 %v1594, 7
        %v1596 = vsub.s32 %v1593, %v1595
        %v1597 = vrot.slane %v1583, %v1596
        %v1598 = vcombine.low %v1590, %v1597
        %v1600 = vunpack.c.l.s4 1966171168
        %v1601 = vunpack.c.0.s8 %v1600
        %v1602 = vlaneseq
        %v1603 = vshrl.u32 %v1602, 7
        %v1604 = vsub.s32 %v1601, %v1603
        %v1605 = vrot.slane %v1598, %v1604
        %v1607 = vadd.f32 %v1525, %v1605
        %v1608 = vlaneseq
        %vm1609 = vcmp.ge.s32.totalorder %v1608, 0
        %vm1610 = vcmp.lt.s32.totalorder %v1608, 512
        %vm1611 = vmand %vm1609, %vm1610
        %1612 = vst.msk [vmem:[%s312] sm:$0xf] %vm1611, %v1607
        %s1613 = sand.u32 %s116, 1
        %s1614 = scalar_lea.sflag [#allocation3], %s1613
        %s1615 = sand.u32 %s116, 1
        %s1616 = smul.addr %s1615, 64
        %s1617 = scalar_lea.vmem [#allocation2], %s1616
        %s1618 = sand.u32 %s144, 1
        %s1619 = scalar_lea.sflag [#allocation5], %s1618
        %s1620 = sand.u32 %s144, 1
        %s1621 = smul.addr %s1620, 256
        %s1622 = scalar_lea.vmem [#allocation4], %s1621
        %p1623 = scmp.lt.s32.totalorder %s28, 1
        %s1624 = scalar_select %p1623, %s28, 1
        %s1625 = scalar_lea.vmem %s5, %s1624
        %p1626 = scmp.lt.s32.totalorder %s28, 1
        %s1627 = scalar_select %p1626, %s28, 1
        %s1628 = smul.addr %s1627, 4
        %s1629 = scalar_lea.vmem %s6, %s1628
        // Predicated region
        $region37: #{vector_quantizer_forward.1} parent=31 // pred_check
          %p1630 = pneg %p126
        $region38: #{vector_quantizer_forward.1} parent=31 // pred_check_branch
          %1632 = sbr.rel (%p1630) target = $region40
        $region39: #{vector_quantizer_forward.1} parent=31 // pred_region
          %s1633 = smul.u32 8, %s29
          %s1635 = ssub.s32 1024, 1024
          %1636 = vsyncadd %s1614, %s1635
          %s1637 = smul.addr %s28, 8
          %s1638 = sadd.s32 %s1633, %s1637
          %s1639 = smul.addr %s1638, 128
          %s1640 = scalar_lea.hbm %s3, %s1639
          %s1641 = sshll.u32 %s1617, 4
          %s1642 = int_to_ptr.vmem [resolvable:$true] %s1641
          %1647 = dma.vmem_to_hbm [thread:$0]  %s1642, 1024, %s1640, %s1614, 128, 128, 8
        $region40: #{vector_quantizer_forward.1} parent=31 // pred_fallthru
          _
        // Predicated region
        $region41: #{vector_quantizer_forward.1} parent=31 // pred_check
          %p1648 = pneg %p154
        $region42: #{vector_quantizer_forward.1} parent=31 // pred_check_branch
          %1650 = sbr.rel (%p1648) target = $region44
        $region43: #{vector_quantizer_forward.1} parent=31 // pred_region
          %s1651 = smul.u32 8, %s29
          %s1653 = ssub.s32 4096, 4096
          %1654 = vsyncadd %s1619, %s1653
          %s1655 = smul.addr %s1651, 4
          %s1656 = smul.addr %s28, 32
          %s1657 = sadd.s32 %s1655, %s1656
          %s1658 = smul.addr %s1657, 128
          %s1659 = scalar_lea.hbm %s4, %s1658
          %s1660 = sshll.u32 %s1622, 4
          %s1661 = int_to_ptr.vmem [resolvable:$true] %s1660
          %1666 = dma.vmem_to_hbm [thread:$0]  %s1661, 4096, %s1659, %s1619, 512, 512, 32
        $region44: #{vector_quantizer_forward.1} parent=31 // pred_fallthru
          _
        // Predicated region
        $region45: #{vector_quantizer_forward.1} parent=31 // pred_check
          %p1667 = pneg %p180
        $region46: #{vector_quantizer_forward.1} parent=31 // pred_check_branch
          %1669 = sbr.rel (%p1667) target = $region48
        $region47: #{vector_quantizer_forward.1} parent=31 // pred_region
          _
        $region48: #{vector_quantizer_forward.1} parent=31 // pred_fallthru
          _
        // Predicated region
        $region49: #{vector_quantizer_forward.1} parent=31 // pred_check
          %p1670 = pneg %p206
        $region50: #{vector_quantizer_forward.1} parent=31 // pred_check_branch
          %1672 = sbr.rel (%p1670) target = $region52
        $region51: #{vector_quantizer_forward.1} parent=31 // pred_region
          _
        $region52: #{vector_quantizer_forward.1} parent=31 // pred_fallthru
          _
      $region32: #{vector_quantizer_forward.1} parent=5 // pred_fallthru
        _
      %p1673 = scmp.le.s32.totalorder 2, %s19
      // Predicated region
      $region53: #{vector_quantizer_forward.1} parent=5 // pred_check
        %p1674 = pneg %p1673
      $region54: #{vector_quantizer_forward.1} parent=5 // pred_check_branch
        %1676 = sbr.rel (%p1674) target = $region56
      $region55: #{vector_quantizer_forward.1} parent=5 // pred_region
        %s1677 = ssub.s32 %s19, 2
        // Predicated region
        $region57: #{vector_quantizer_forward.1} parent=55 // pred_check
          %p1678 = pneg %p132
        $region58: #{vector_quantizer_forward.1} parent=55 // pred_check_branch
          %1680 = sbr.rel (%p1678) target = $region60
        $region59: #{vector_quantizer_forward.1} parent=55 // pred_region
          %s1681 = sand.u32 %s117, 1
          %s1682 = scalar_lea.sflag [#allocation3], %s1681
          %s1683 = sand.u32 %s117, 1
          %s1684 = smul.addr %s1683, 64
          %s1685 = scalar_lea.vmem [#allocation2], %s1684
          %1686 = dma.done %s1682, 1024
        $region60: #{vector_quantizer_forward.1} parent=55 // pred_fallthru
          _
        // Predicated region
        $region61: #{vector_quantizer_forward.1} parent=55 // pred_check
          %p1687 = pneg %p160
        $region62: #{vector_quantizer_forward.1} parent=55 // pred_check_branch
          %1689 = sbr.rel (%p1687) target = $region64
        $region63: #{vector_quantizer_forward.1} parent=55 // pred_region
          %s1690 = sand.u32 %s145, 1
          %s1691 = scalar_lea.sflag [#allocation5], %s1690
          %s1692 = sand.u32 %s145, 1
          %s1693 = smul.addr %s1692, 256
          %s1694 = scalar_lea.vmem [#allocation4], %s1693
          %1695 = dma.done %s1691, 4096
        $region64: #{vector_quantizer_forward.1} parent=55 // pred_fallthru
          _
        // Predicated region
        $region65: #{vector_quantizer_forward.1} parent=55 // pred_check
          %p1696 = pneg %p186
        $region66: #{vector_quantizer_forward.1} parent=55 // pred_check_branch
          %1698 = sbr.rel (%p1696) target = $region68
        $region67: #{vector_quantizer_forward.1} parent=55 // pred_region
          %p1699 = scmp.lt.s32.totalorder %s30, 1
          %s1700 = scalar_select %p1699, %s30, 1
          %s1701 = scalar_lea.vmem %s5, %s1700
        $region68: #{vector_quantizer_forward.1} parent=55 // pred_fallthru
          _
        // Predicated region
        $region69: #{vector_quantizer_forward.1} parent=55 // pred_check
          %p1702 = pneg %p212
        $region70: #{vector_quantizer_forward.1} parent=55 // pred_check_branch
          %1704 = sbr.rel (%p1702) target = $region72
        $region71: #{vector_quantizer_forward.1} parent=55 // pred_region
          %p1705 = scmp.lt.s32.totalorder %s30, 1
          %s1706 = scalar_select %p1705, %s30, 1
          %s1707 = smul.addr %s1706, 4
          %s1708 = scalar_lea.vmem %s6, %s1707
        $region72: #{vector_quantizer_forward.1} parent=55 // pred_fallthru
          _
      $region56: #{vector_quantizer_forward.1} parent=5 // pred_fallthru
        _
    $region6: #{vector_quantizer_forward.1} parent=1 // loop_footer
      %s23 = sadd.s32 1, %s19
    $region7: #{vector_quantizer_forward.1} parent=1 // loop_footer_branch
      %18 = sbr.rel target = $region3
    $region8: #{vector_quantizer_forward.1} parent=1 // loop_exit
      _
    %1709 = vsyncpa [#allocation3], 1
    %s1710 = scalar_lea.sflag [#allocation3], 1
    %1711 = vsyncpa %s1710, 1
    %1712 = vsyncpa [#allocation5], 1
    %s1713 = scalar_lea.sflag [#allocation5], 1
    %1714 = vsyncpa %s1713, 1

</llo_original>
